<compile_context>
chip_gen: v7x
topology: tpu7x:2x2x1
jax: 0.10.0
libtpu: 0.0.40
codegen_flags: <defaults>
</compile_context>

<pallas_src>
import functools

import jax
import jax.numpy as jnp
import numpy as np
from jax import lax
from jax.experimental import pallas as pl
from jax.experimental.pallas import tpu as pltpu


# --------------------------------------------------------------------------- #
# Pallas kernel
# --------------------------------------------------------------------------- #
def _unet_inner_kernel(xv_ref, wd_ref, wu_ref, s_ref, b_ref, o_ref, *,
                       cin, inner, outer, negative_slope):
    # xv_ref: (1, Hh, 2, Wh, 2*cin)      x, row-parity split / column-pairs in lanes (f32)
    # wd_ref: (2, 2, 4*cin, inner)       packed down-conv weights (bf16)
    # wu_ref: (2, 2, 4*inner, outer)     packed up-(transposed)conv weights (bf16)
    # s_ref, b_ref: (1, outer)           folded BatchNorm scale / shift (f32)
    # o_ref : (1, Hh, 2, Wh, 2*(cin+outer))  phase-packed output
    Hh = xv_ref.shape[1]
    Wh = xv_ref.shape[3]
    nfl = Hh * Wh

    xv = xv_ref[0]                       # (Hh, 2, Wh, 2*cin) original x (kept f32 for concat)

    # ---- LeakyReLU(0.2) on the conv input (bf16 MXU operands) --------------
    def leaky(v):
        return jnp.where(v >= 0, v, negative_slope * v).astype(jnp.bfloat16)

    xa0 = leaky(xv[:, 0])                # rows 2p      -> (Hh, Wh, 2*cin)
    xa1 = leaky(xv[:, 1])                # rows 2p + 1

    # ---- build z2: z2[p, q, m*cin:(m+1)*cin] = leaky(x)[2p+a-1, 2q+b-1, :], m=2a+b ----
    zrow = jnp.zeros((1, Wh, cin), jnp.bfloat16)
    zcol = jnp.zeros((Hh + 1, 1, cin), jnp.bfloat16)

    def pad(v, top, left):
        v = jnp.concatenate([zrow, v] if top else [v, zrow], axis=0)
        v = jnp.concatenate([zcol, v] if left else [v, zcol], axis=1)
        return v

    blk00 = pad(xa1[:, :, cin:], top=True,  left=True)    # rows 2p-1, cols 2q-1
    blk01 = pad(xa1[:, :, :cin], top=True,  left=False)   # rows 2p-1, cols 2q
    blk10 = pad(xa0[:, :, cin:], top=False, left=True)    # rows 2p,   cols 2q-1
    blk11 = pad(xa0[:, :, :cin], top=False, left=False)   # rows 2p,   cols 2q
    z2 = jnp.concatenate([blk00, blk01, blk10, blk11], axis=-1)   # (Hh+1, Wh+1, 4*cin)

    # ---- down conv: 4x4 stride-2  ==  4 matmuls with K = 4*cin -------------
    dacc = jnp.zeros((nfl, inner), jnp.float32)
    for ay in (0, 1):
        for ax in (0, 1):
            lhs = z2[ay:ay + Hh, ax:ax + Wh, :].reshape(nfl, 4 * cin)
            dacc = dacc + jnp.dot(lhs, wd_ref[ay, ax],
                                  preferred_element_type=jnp.float32)

    # ---- ReLU, then up (transposed) conv phase decomposition ---------------
    d = jnp.maximum(dacc, 0.0).astype(jnp.bfloat16).reshape(Hh, Wh, inner)

    zr = jnp.zeros((1, Wh, inner), jnp.bfloat16)
    dpad = jnp.concatenate([zr, d, zr], axis=0)                        # (Hh+2, Wh, inner)
    zc = jnp.zeros((Hh + 2, 1, inner), jnp.bfloat16)
    dpad = jnp.concatenate([zc, dpad, zc], axis=1)                     # (Hh+2, Wh+2, inner)

    # d2[p, q, m*inner:(m+1)*inner] = relu(d)[p+a-1, q+b-1, :], m = 2a+b
    d2 = jnp.concatenate([dpad[a:a + Hh + 1, b:b + Wh + 1, :]
                          for a in (0, 1) for b in (0, 1)], axis=-1)   # (Hh+1, Wh+1, 4*inner)

    scale = s_ref[...]          # (1, outer) f32
    shift = b_ref[...]

    # u[2i+py, 2j+px] = d2[i+py, j+px] @ Wu2[py, px]   (+ folded BN epilogue, f32)
    phases = {}
    for py in (0, 1):
        for px in (0, 1):
            lhs = d2[py:py + Hh, px:px + Wh, :].reshape(nfl, 4 * inner)
            ph = jnp.dot(lhs, wu_ref[py, px], preferred_element_type=jnp.float32)
            ph = ph * scale + shift
            phases[(py, px)] = ph.reshape(Hh, Wh, outer)

    # ---- skip concat + phase-packed lane-dense store ------------------------
    slabs = []
    for py in (0, 1):
        xrow = xv[:, py]                          # (Hh, Wh, 2*cin), original x
        slab = jnp.concatenate(
            [xrow[:, :, :cin], phases[(py, 0)],   # output column 2j
             xrow[:, :, cin:], phases[(py, 1)]],  # output column 2j+1
            axis=-1)                              # (Hh, Wh, 2*(cin+outer))
        slabs.append(slab.astype(o_ref.dtype))
    out_val = jnp.stack(slabs, axis=1)            # (Hh, 2, Wh, 2*(cin+outer))
    o_ref[...] = out_val[None]


# --------------------------------------------------------------------------- #
# Host-side packing helpers
# --------------------------------------------------------------------------- #
def _fold_bn(bn, eps=1e-5):
    g, b, m, v = bn
    s = g / jnp.sqrt(v + eps)
    return s[None, :].astype(jnp.float32), (b - m * s)[None, :].astype(jnp.float32)


def _pack_down_weight(wd):
    # wd: (4, 4, cin, inner) HWIO -> (2, 2, 4*cin, inner); block m=2a+b of [ay, ax]
    # holds wd[2*ay + a, 2*ax + b].
    _, _, cin, inner = wd.shape
    w = wd.reshape(2, 2, 2, 2, cin, inner)        # (ay, a, ax, b, c, o)
    w = jnp.transpose(w, (0, 2, 1, 3, 4, 5))      # (ay, ax, a, b, c, o)
    return w.reshape(2, 2, 4 * cin, inner)


def _pack_up_weight(wu):
    # wu: (4, 4, inner, outer) scatter-form HWIO of the ConvTranspose kernel.
    # block m=2a+b of [py, px] holds wu[3 - py - 2a, 3 - px - 2b].
    rows = []
    for py in (0, 1):
        cols = []
        for px in (0, 1):
            blocks = [wu[3 - py - 2 * a, 3 - px - 2 * b]
                      for a in (0, 1) for b in (0, 1)]
            cols.append(jnp.concatenate(blocks, axis=0))   # (4*inner, outer)
        rows.append(jnp.stack(cols, axis=0))
    return jnp.stack(rows, axis=0)                         # (2, 2, 4*inner, outer)


# --------------------------------------------------------------------------- #
# Wrapper
# --------------------------------------------------------------------------- #
def unet_innermost_forward(x, w_down, w_up, bn_up, *, negative_slope=0.2, eps=1e-5):
    N, H, W, cin = x.shape
    assert H % 2 == 0 and W % 2 == 0, "spatial dims must be even (stride-2 down/up)"
    assert w_down.shape[:3] == (4, 4, cin)
    inner = w_down.shape[-1]
    assert w_up.shape[:3] == (4, 4, inner)
    outer = w_up.shape[-1]
    Hh, Wh = H // 2, W // 2
    ct = cin + outer

    s_up, b_up = _fold_bn(bn_up, eps)
    wd2 = _pack_down_weight(w_down).astype(jnp.bfloat16)
    wu2 = _pack_up_weight(w_up).astype(jnp.bfloat16)

    # Metadata-only relayout of x: row parity split, column pairs packed into lanes.
    xv = x.reshape(N, Hh, 2, Wh, 2 * cin)

    kernel = functools.partial(_unet_inner_kernel, cin=cin, inner=inner, outer=outer,
                               negative_slope=negative_slope)

    out5 = pl.pallas_call(
        kernel,
        out_shape=jax.ShapeDtypeStruct((N, Hh, 2, Wh, 2 * ct), x.dtype),
        grid_spec=pltpu.PrefetchScalarGridSpec(
            num_scalar_prefetch=0,
            grid=(N,),
            in_specs=[
                pl.BlockSpec((1, Hh, 2, Wh, 2 * cin), lambda n: (n, 0, 0, 0, 0)),
                pl.BlockSpec((2, 2, 4 * cin, inner), lambda n: (0, 0, 0, 0)),
                pl.BlockSpec((2, 2, 4 * inner, outer), lambda n: (0, 0, 0, 0)),
                pl.BlockSpec((1, outer), lambda n: (0, 0)),
                pl.BlockSpec((1, outer), lambda n: (0, 0)),
            ],
            out_specs=pl.BlockSpec((1, Hh, 2, Wh, 2 * ct), lambda n: (n, 0, 0, 0, 0)),
        ),
        compiler_params=pltpu.CompilerParams(
            dimension_semantics=("parallel",),
            vmem_limit_bytes=64 * 1024 * 1024,
        ),
    )(xv, wd2, wu2, s_up, b_up)

    # Free reshape back to NHWC: (N, Hh, 2, Wh, 2*ct) -> (N, H, W, ct)
    return out5.reshape(N, H, W, ct)


# --------------------------------------------------------------------------- #
# Pure-JAX reference (mirrors the bf16 MXU-operand quantization of the kernel)
# --------------------------------------------------------------------------- #
def unet_innermost_reference(x, w_down, w_up, bn_up, *, negative_slope=0.2, eps=1e-5):
    dn = ('NHWC', 'HWIO', 'NHWC')
    xl = jnp.where(x >= 0, x, negative_slope * x)
    xl = xl.astype(jnp.bfloat16).astype(jnp.float32)
    wd = w_down.astype(jnp.bfloat16).astype(jnp.float32)
    d = lax.conv_general_dilated(xl, wd, window_strides=(2, 2),
                                 padding=((1, 1), (1, 1)), dimension_numbers=dn)
    d = jnp.maximum(d, 0.0).astype(jnp.bfloat16).astype(jnp.float32)
    wu = w_up.astype(jnp.bfloat16).astype(jnp.float32)
    wu_flipped = wu[::-1, ::-1]      # ConvTranspose(k=4, s=2, p=1) == dilated conv w/ flip
    u = lax.conv_general_dilated(d, wu_flipped, window_strides=(1, 1),
                                 padding=((2, 2), (2, 2)), lhs_dilation=(2, 2),
                                 dimension_numbers=dn)
    g, b, m, v = bn_up
    u = (u - m) * (g / jnp.sqrt(v + eps)) + b
    return jnp.concatenate([x, u], axis=-1)


# --------------------------------------------------------------------------- #
if __name__ == "__main__":
    key = jax.random.PRNGKey(0)
    N, H, W = 2, 16, 16
    outer_nc, inner_nc = 4, 8        # innermost block: input_nc == outer_nc

    ks = jax.random.split(key, 8)
    x = jax.random.normal(ks[0], (N, H, W, outer_nc), jnp.float32)
    w_down = 0.1 * jax.random.normal(ks[1], (4, 4, outer_nc, inner_nc), jnp.float32)
    w_up = 0.1 * jax.random.normal(ks[2], (4, 4, inner_nc, outer_nc), jnp.float32)

    gamma = 1.0 + 0.1 * jax.random.normal(ks[3], (outer_nc,), jnp.float32)
    beta = 0.1 * jax.random.normal(ks[4], (outer_nc,), jnp.float32)
    rmean = 0.1 * jax.random.normal(ks[5], (outer_nc,), jnp.float32)
    rvar = 1.0 + 0.5 * jax.random.uniform(ks[6], (outer_nc,), jnp.float32)
    bn_up = (gamma, beta, rmean, rvar)

    out = unet_innermost_forward(x, w_down, w_up, bn_up)
    out = jax.block_until_ready(out)

    ref = unet_innermost_reference(x, w_down, w_up, bn_up)
    np.testing.assert_allclose(np.asarray(out), np.asarray(ref), rtol=5e-3, atol=5e-3)
    print("KERNEL_OK")
</pallas_src>

<mosaic_0001>
module attributes {stable_mosaic.version = 11 : i64} {
  func.func @_unet_inner_kernel(%arg0: i32, %arg1: memref<1x8x2x8x8xf32, #tpu.memory_space<vmem>>, %arg2: memref<2x2x16x8xbf16, #tpu.memory_space<vmem>>, %arg3: memref<2x2x32x4xbf16, #tpu.memory_space<vmem>>, %arg4: memref<1x4xf32, #tpu.memory_space<vmem>>, %arg5: memref<1x4xf32, #tpu.memory_space<vmem>>, %arg6: memref<1x8x2x8x16xf32, #tpu.memory_space<vmem>>) attributes {dimension_semantics = [#tpu.dimension_semantics<parallel>], iteration_bounds = array<i64: 2>, scalar_prefetch = 0 : i64, scratch_operands = 0 : i64, tpu.core_type = #tpu.core_type<tc>, window_params = [{transform_indices = @transform_0, window_bounds = array<i64: 1, 8, 2, 8, 8>}, {pipeline_mode = #tpu.pipeline_mode<synchronous>, transform_indices = @transform_1, window_bounds = array<i64: 2, 2, 16, 8>}, {pipeline_mode = #tpu.pipeline_mode<synchronous>, transform_indices = @transform_2, window_bounds = array<i64: 2, 2, 32, 4>}, {pipeline_mode = #tpu.pipeline_mode<synchronous>, transform_indices = @transform_3, window_bounds = array<i64: 1, 4>}, {pipeline_mode = #tpu.pipeline_mode<synchronous>, transform_indices = @transform_4, window_bounds = array<i64: 1, 4>}, {transform_indices = @transform_5, window_bounds = array<i64: 1, 8, 2, 8, 16>}]} {
    %c0 = arith.constant 0 : index
    %c0_0 = arith.constant 0 : index
    %c0_1 = arith.constant 0 : index
    %c0_2 = arith.constant 0 : index
    %c0_3 = arith.constant 0 : index
    %0 = vector.load %arg1[%c0, %c0_0, %c0_1, %c0_2, %c0_3] : memref<1x8x2x8x8xf32, #tpu.memory_space<vmem>>, vector<1x8x2x8x8xf32>
    %1 = vector.shape_cast %0 : vector<1x8x2x8x8xf32> to vector<8x2x8x8xf32>
    %2 = vector.extract_strided_slice %1 {offsets = [0, 0, 0, 0], sizes = [8, 1, 8, 8], strides = [1, 1, 1, 1]} : vector<8x2x8x8xf32> to vector<8x1x8x8xf32>
    %3 = vector.shape_cast %2 : vector<8x1x8x8xf32> to vector<8x8x8xf32>
    %cst = arith.constant 0.000000e+00 : f32
    %4 = vector.broadcast %cst : f32 to vector<8x8x8xf32>
    %5 = arith.cmpf oge, %3, %4 : vector<8x8x8xf32>
    %cst_4 = arith.constant 2.000000e-01 : f32
    %6 = vector.broadcast %cst_4 : f32 to vector<8x8x8xf32>
    %7 = arith.mulf %6, %3 : vector<8x8x8xf32>
    %8 = arith.select %5, %3, %7 : vector<8x8x8xi1>, vector<8x8x8xf32>
    %9 = arith.truncf %8 : vector<8x8x8xf32> to vector<8x8x8xbf16>
    %10 = vector.extract_strided_slice %1 {offsets = [0, 1, 0, 0], sizes = [8, 1, 8, 8], strides = [1, 1, 1, 1]} : vector<8x2x8x8xf32> to vector<8x1x8x8xf32>
    %11 = vector.shape_cast %10 : vector<8x1x8x8xf32> to vector<8x8x8xf32>
    %cst_5 = arith.constant 0.000000e+00 : f32
    %12 = vector.broadcast %cst_5 : f32 to vector<8x8x8xf32>
    %13 = arith.cmpf oge, %11, %12 : vector<8x8x8xf32>
    %cst_6 = arith.constant 2.000000e-01 : f32
    %14 = vector.broadcast %cst_6 : f32 to vector<8x8x8xf32>
    %15 = arith.mulf %14, %11 : vector<8x8x8xf32>
    %16 = arith.select %13, %11, %15 : vector<8x8x8xi1>, vector<8x8x8xf32>
    %17 = arith.truncf %16 : vector<8x8x8xf32> to vector<8x8x8xbf16>
    %cst_7 = arith.constant 0.000000e+00 : bf16
    %18 = vector.broadcast %cst_7 : bf16 to vector<1x8x4xbf16>
    %cst_8 = arith.constant 0.000000e+00 : bf16
    %19 = vector.broadcast %cst_8 : bf16 to vector<9x1x4xbf16>
    %20 = vector.extract_strided_slice %17 {offsets = [0, 0, 4], sizes = [8, 8, 4], strides = [1, 1, 1]} : vector<8x8x8xbf16> to vector<8x8x4xbf16>
    %21 = tpu.concatenate %18, %20 in 0 : vector<1x8x4xbf16>, vector<8x8x4xbf16> -> vector<9x8x4xbf16>
    %22 = tpu.concatenate %19, %21 in 1 : vector<9x1x4xbf16>, vector<9x8x4xbf16> -> vector<9x9x4xbf16>
    %23 = vector.extract_strided_slice %17 {offsets = [0, 0, 0], sizes = [8, 8, 4], strides = [1, 1, 1]} : vector<8x8x8xbf16> to vector<8x8x4xbf16>
    %24 = tpu.concatenate %18, %23 in 0 : vector<1x8x4xbf16>, vector<8x8x4xbf16> -> vector<9x8x4xbf16>
    %25 = tpu.concatenate %24, %19 in 1 : vector<9x8x4xbf16>, vector<9x1x4xbf16> -> vector<9x9x4xbf16>
    %26 = vector.extract_strided_slice %9 {offsets = [0, 0, 4], sizes = [8, 8, 4], strides = [1, 1, 1]} : vector<8x8x8xbf16> to vector<8x8x4xbf16>
    %27 = tpu.concatenate %26, %18 in 0 : vector<8x8x4xbf16>, vector<1x8x4xbf16> -> vector<9x8x4xbf16>
    %28 = tpu.concatenate %19, %27 in 1 : vector<9x1x4xbf16>, vector<9x8x4xbf16> -> vector<9x9x4xbf16>
    %29 = vector.extract_strided_slice %9 {offsets = [0, 0, 0], sizes = [8, 8, 4], strides = [1, 1, 1]} : vector<8x8x8xbf16> to vector<8x8x4xbf16>
    %30 = tpu.concatenate %29, %18 in 0 : vector<8x8x4xbf16>, vector<1x8x4xbf16> -> vector<9x8x4xbf16>
    %31 = tpu.concatenate %30, %19 in 1 : vector<9x8x4xbf16>, vector<9x1x4xbf16> -> vector<9x9x4xbf16>
    %32 = tpu.concatenate %22, %25, %28, %31 in 2 : vector<9x9x4xbf16>, vector<9x9x4xbf16>, vector<9x9x4xbf16>, vector<9x9x4xbf16> -> vector<9x9x16xbf16>
    %cst_9 = arith.constant 0.000000e+00 : f32
    %33 = vector.broadcast %cst_9 : f32 to vector<64x8xf32>
    %34 = vector.extract_strided_slice %32 {offsets = [0, 0, 0], sizes = [8, 8, 16], strides = [1, 1, 1]} : vector<9x9x16xbf16> to vector<8x8x16xbf16>
    %35 = vector.shape_cast %34 : vector<8x8x16xbf16> to vector<64x16xbf16>
    %c0_10 = arith.constant 0 : index
    %c0_11 = arith.constant 0 : index
    %c0_12 = arith.constant 0 : index
    %c0_13 = arith.constant 0 : index
    %36 = vector.load %arg2[%c0_10, %c0_11, %c0_12, %c0_13] : memref<2x2x16x8xbf16, #tpu.memory_space<vmem>>, vector<1x1x16x8xbf16>
    %37 = vector.shape_cast %36 : vector<1x1x16x8xbf16> to vector<16x8xbf16>
    %cst_14 = arith.constant dense<0.000000e+00> : vector<64x8xf32>
    %38 = tpu.matmul %35, %37, %cst_14 {dimension_numbers = #tpu.dot_dimension_numbers<[1], [0], [0], [1], [0, 0, 1, 1], [], []>} : vector<64x16xbf16>, vector<16x8xbf16>, vector<64x8xf32> -> vector<64x8xf32>
    %39 = arith.addf %33, %38 : vector<64x8xf32>
    %40 = vector.extract_strided_slice %32 {offsets = [0, 1, 0], sizes = [8, 8, 16], strides = [1, 1, 1]} : vector<9x9x16xbf16> to vector<8x8x16xbf16>
    %41 = vector.shape_cast %40 : vector<8x8x16xbf16> to vector<64x16xbf16>
    %c0_15 = arith.constant 0 : index
    %c1 = arith.constant 1 : index
    %c0_16 = arith.constant 0 : index
    %c0_17 = arith.constant 0 : index
    %42 = vector.load %arg2[%c0_15, %c1, %c0_16, %c0_17] : memref<2x2x16x8xbf16, #tpu.memory_space<vmem>>, vector<1x1x16x8xbf16>
    %43 = vector.shape_cast %42 : vector<1x1x16x8xbf16> to vector<16x8xbf16>
    %cst_18 = arith.constant dense<0.000000e+00> : vector<64x8xf32>
    %44 = tpu.matmul %41, %43, %cst_18 {dimension_numbers = #tpu.dot_dimension_numbers<[1], [0], [0], [1], [0, 0, 1, 1], [], []>} : vector<64x16xbf16>, vector<16x8xbf16>, vector<64x8xf32> -> vector<64x8xf32>
    %45 = arith.addf %39, %44 : vector<64x8xf32>
    %46 = vector.extract_strided_slice %32 {offsets = [1, 0, 0], sizes = [8, 8, 16], strides = [1, 1, 1]} : vector<9x9x16xbf16> to vector<8x8x16xbf16>
    %47 = vector.shape_cast %46 : vector<8x8x16xbf16> to vector<64x16xbf16>
    %c1_19 = arith.constant 1 : index
    %c0_20 = arith.constant 0 : index
    %c0_21 = arith.constant 0 : index
    %c0_22 = arith.constant 0 : index
    %48 = vector.load %arg2[%c1_19, %c0_20, %c0_21, %c0_22] : memref<2x2x16x8xbf16, #tpu.memory_space<vmem>>, vector<1x1x16x8xbf16>
    %49 = vector.shape_cast %48 : vector<1x1x16x8xbf16> to vector<16x8xbf16>
    %cst_23 = arith.constant dense<0.000000e+00> : vector<64x8xf32>
    %50 = tpu.matmul %47, %49, %cst_23 {dimension_numbers = #tpu.dot_dimension_numbers<[1], [0], [0], [1], [0, 0, 1, 1], [], []>} : vector<64x16xbf16>, vector<16x8xbf16>, vector<64x8xf32> -> vector<64x8xf32>
    %51 = arith.addf %45, %50 : vector<64x8xf32>
    %52 = vector.extract_strided_slice %32 {offsets = [1, 1, 0], sizes = [8, 8, 16], strides = [1, 1, 1]} : vector<9x9x16xbf16> to vector<8x8x16xbf16>
    %53 = vector.shape_cast %52 : vector<8x8x16xbf16> to vector<64x16xbf16>
    %c1_24 = arith.constant 1 : index
    %c1_25 = arith.constant 1 : index
    %c0_26 = arith.constant 0 : index
    %c0_27 = arith.constant 0 : index
    %54 = vector.load %arg2[%c1_24, %c1_25, %c0_26, %c0_27] : memref<2x2x16x8xbf16, #tpu.memory_space<vmem>>, vector<1x1x16x8xbf16>
    %55 = vector.shape_cast %54 : vector<1x1x16x8xbf16> to vector<16x8xbf16>
    %cst_28 = arith.constant dense<0.000000e+00> : vector<64x8xf32>
    %56 = tpu.matmul %53, %55, %cst_28 {dimension_numbers = #tpu.dot_dimension_numbers<[1], [0], [0], [1], [0, 0, 1, 1], [], []>} : vector<64x16xbf16>, vector<16x8xbf16>, vector<64x8xf32> -> vector<64x8xf32>
    %57 = arith.addf %51, %56 : vector<64x8xf32>
    %cst_29 = arith.constant 0.000000e+00 : f32
    %58 = vector.broadcast %cst_29 : f32 to vector<64x8xf32>
    %59 = arith.maximumf %57, %58 : vector<64x8xf32>
    %60 = arith.truncf %59 : vector<64x8xf32> to vector<64x8xbf16>
    %61 = vector.shape_cast %60 : vector<64x8xbf16> to vector<8x8x8xbf16>
    %cst_30 = arith.constant 0.000000e+00 : bf16
    %62 = vector.broadcast %cst_30 : bf16 to vector<1x8x8xbf16>
    %63 = tpu.concatenate %62, %61, %62 in 0 : vector<1x8x8xbf16>, vector<8x8x8xbf16>, vector<1x8x8xbf16> -> vector<10x8x8xbf16>
    %cst_31 = arith.constant 0.000000e+00 : bf16
    %64 = vector.broadcast %cst_31 : bf16 to vector<10x1x8xbf16>
    %65 = tpu.concatenate %64, %63, %64 in 1 : vector<10x1x8xbf16>, vector<10x8x8xbf16>, vector<10x1x8xbf16> -> vector<10x10x8xbf16>
    %66 = vector.extract_strided_slice %65 {offsets = [0, 0, 0], sizes = [9, 9, 8], strides = [1, 1, 1]} : vector<10x10x8xbf16> to vector<9x9x8xbf16>
    %67 = vector.extract_strided_slice %65 {offsets = [0, 1, 0], sizes = [9, 9, 8], strides = [1, 1, 1]} : vector<10x10x8xbf16> to vector<9x9x8xbf16>
    %68 = vector.extract_strided_slice %65 {offsets = [1, 0, 0], sizes = [9, 9, 8], strides = [1, 1, 1]} : vector<10x10x8xbf16> to vector<9x9x8xbf16>
    %69 = vector.extract_strided_slice %65 {offsets = [1, 1, 0], sizes = [9, 9, 8], strides = [1, 1, 1]} : vector<10x10x8xbf16> to vector<9x9x8xbf16>
    %70 = tpu.concatenate %66, %67, %68, %69 in 2 : vector<9x9x8xbf16>, vector<9x9x8xbf16>, vector<9x9x8xbf16>, vector<9x9x8xbf16> -> vector<9x9x32xbf16>
    %c0_32 = arith.constant 0 : index
    %c0_33 = arith.constant 0 : index
    %71 = vector.load %arg4[%c0_32, %c0_33] : memref<1x4xf32, #tpu.memory_space<vmem>>, vector<1x4xf32>
    %c0_34 = arith.constant 0 : index
    %c0_35 = arith.constant 0 : index
    %72 = vector.load %arg5[%c0_34, %c0_35] : memref<1x4xf32, #tpu.memory_space<vmem>>, vector<1x4xf32>
    %73 = vector.extract_strided_slice %70 {offsets = [0, 0, 0], sizes = [8, 8, 32], strides = [1, 1, 1]} : vector<9x9x32xbf16> to vector<8x8x32xbf16>
    %74 = vector.shape_cast %73 : vector<8x8x32xbf16> to vector<64x32xbf16>
    %c0_36 = arith.constant 0 : index
    %c0_37 = arith.constant 0 : index
    %c0_38 = arith.constant 0 : index
    %c0_39 = arith.constant 0 : index
    %75 = vector.load %arg3[%c0_36, %c0_37, %c0_38, %c0_39] : memref<2x2x32x4xbf16, #tpu.memory_space<vmem>>, vector<1x1x32x4xbf16>
    %76 = vector.shape_cast %75 : vector<1x1x32x4xbf16> to vector<32x4xbf16>
    %cst_40 = arith.constant dense<0.000000e+00> : vector<64x4xf32>
    %77 = tpu.matmul %74, %76, %cst_40 {dimension_numbers = #tpu.dot_dimension_numbers<[1], [0], [0], [1], [0, 0, 1, 1], [], []>} : vector<64x32xbf16>, vector<32x4xbf16>, vector<64x4xf32> -> vector<64x4xf32>
    %78 = vector.broadcast %71 : vector<1x4xf32> to vector<64x4xf32>
    %79 = arith.mulf %77, %78 : vector<64x4xf32>
    %80 = vector.broadcast %72 : vector<1x4xf32> to vector<64x4xf32>
    %81 = arith.addf %79, %80 : vector<64x4xf32>
    %82 = vector.shape_cast %81 : vector<64x4xf32> to vector<8x8x4xf32>
    %83 = vector.extract_strided_slice %70 {offsets = [0, 1, 0], sizes = [8, 8, 32], strides = [1, 1, 1]} : vector<9x9x32xbf16> to vector<8x8x32xbf16>
    %84 = vector.shape_cast %83 : vector<8x8x32xbf16> to vector<64x32xbf16>
    %c0_41 = arith.constant 0 : index
    %c1_42 = arith.constant 1 : index
    %c0_43 = arith.constant 0 : index
    %c0_44 = arith.constant 0 : index
    %85 = vector.load %arg3[%c0_41, %c1_42, %c0_43, %c0_44] : memref<2x2x32x4xbf16, #tpu.memory_space<vmem>>, vector<1x1x32x4xbf16>
    %86 = vector.shape_cast %85 : vector<1x1x32x4xbf16> to vector<32x4xbf16>
    %cst_45 = arith.constant dense<0.000000e+00> : vector<64x4xf32>
    %87 = tpu.matmul %84, %86, %cst_45 {dimension_numbers = #tpu.dot_dimension_numbers<[1], [0], [0], [1], [0, 0, 1, 1], [], []>} : vector<64x32xbf16>, vector<32x4xbf16>, vector<64x4xf32> -> vector<64x4xf32>
    %88 = vector.broadcast %71 : vector<1x4xf32> to vector<64x4xf32>
    %89 = arith.mulf %87, %88 : vector<64x4xf32>
    %90 = vector.broadcast %72 : vector<1x4xf32> to vector<64x4xf32>
    %91 = arith.addf %89, %90 : vector<64x4xf32>
    %92 = vector.shape_cast %91 : vector<64x4xf32> to vector<8x8x4xf32>
    %93 = vector.extract_strided_slice %70 {offsets = [1, 0, 0], sizes = [8, 8, 32], strides = [1, 1, 1]} : vector<9x9x32xbf16> to vector<8x8x32xbf16>
    %94 = vector.shape_cast %93 : vector<8x8x32xbf16> to vector<64x32xbf16>
    %c1_46 = arith.constant 1 : index
    %c0_47 = arith.constant 0 : index
    %c0_48 = arith.constant 0 : index
    %c0_49 = arith.constant 0 : index
    %95 = vector.load %arg3[%c1_46, %c0_47, %c0_48, %c0_49] : memref<2x2x32x4xbf16, #tpu.memory_space<vmem>>, vector<1x1x32x4xbf16>
    %96 = vector.shape_cast %95 : vector<1x1x32x4xbf16> to vector<32x4xbf16>
    %cst_50 = arith.constant dense<0.000000e+00> : vector<64x4xf32>
    %97 = tpu.matmul %94, %96, %cst_50 {dimension_numbers = #tpu.dot_dimension_numbers<[1], [0], [0], [1], [0, 0, 1, 1], [], []>} : vector<64x32xbf16>, vector<32x4xbf16>, vector<64x4xf32> -> vector<64x4xf32>
    %98 = vector.broadcast %71 : vector<1x4xf32> to vector<64x4xf32>
    %99 = arith.mulf %97, %98 : vector<64x4xf32>
    %100 = vector.broadcast %72 : vector<1x4xf32> to vector<64x4xf32>
    %101 = arith.addf %99, %100 : vector<64x4xf32>
    %102 = vector.shape_cast %101 : vector<64x4xf32> to vector<8x8x4xf32>
    %103 = vector.extract_strided_slice %70 {offsets = [1, 1, 0], sizes = [8, 8, 32], strides = [1, 1, 1]} : vector<9x9x32xbf16> to vector<8x8x32xbf16>
    %104 = vector.shape_cast %103 : vector<8x8x32xbf16> to vector<64x32xbf16>
    %c1_51 = arith.constant 1 : index
    %c1_52 = arith.constant 1 : index
    %c0_53 = arith.constant 0 : index
    %c0_54 = arith.constant 0 : index
    %105 = vector.load %arg3[%c1_51, %c1_52, %c0_53, %c0_54] : memref<2x2x32x4xbf16, #tpu.memory_space<vmem>>, vector<1x1x32x4xbf16>
    %106 = vector.shape_cast %105 : vector<1x1x32x4xbf16> to vector<32x4xbf16>
    %cst_55 = arith.constant dense<0.000000e+00> : vector<64x4xf32>
    %107 = tpu.matmul %104, %106, %cst_55 {dimension_numbers = #tpu.dot_dimension_numbers<[1], [0], [0], [1], [0, 0, 1, 1], [], []>} : vector<64x32xbf16>, vector<32x4xbf16>, vector<64x4xf32> -> vector<64x4xf32>
    %108 = vector.broadcast %71 : vector<1x4xf32> to vector<64x4xf32>
    %109 = arith.mulf %107, %108 : vector<64x4xf32>
    %110 = vector.broadcast %72 : vector<1x4xf32> to vector<64x4xf32>
    %111 = arith.addf %109, %110 : vector<64x4xf32>
    %112 = vector.shape_cast %111 : vector<64x4xf32> to vector<8x8x4xf32>
    %113 = vector.extract_strided_slice %1 {offsets = [0, 0, 0, 0], sizes = [8, 1, 8, 8], strides = [1, 1, 1, 1]} : vector<8x2x8x8xf32> to vector<8x1x8x8xf32>
    %114 = vector.shape_cast %113 : vector<8x1x8x8xf32> to vector<8x8x8xf32>
    %115 = vector.extract_strided_slice %114 {offsets = [0, 0, 0], sizes = [8, 8, 4], strides = [1, 1, 1]} : vector<8x8x8xf32> to vector<8x8x4xf32>
    %116 = vector.extract_strided_slice %114 {offsets = [0, 0, 4], sizes = [8, 8, 4], strides = [1, 1, 1]} : vector<8x8x8xf32> to vector<8x8x4xf32>
    %117 = tpu.concatenate %115, %82, %116, %92 in 2 : vector<8x8x4xf32>, vector<8x8x4xf32>, vector<8x8x4xf32>, vector<8x8x4xf32> -> vector<8x8x16xf32>
    %118 = vector.extract_strided_slice %1 {offsets = [0, 1, 0, 0], sizes = [8, 1, 8, 8], strides = [1, 1, 1, 1]} : vector<8x2x8x8xf32> to vector<8x1x8x8xf32>
    %119 = vector.shape_cast %118 : vector<8x1x8x8xf32> to vector<8x8x8xf32>
    %120 = vector.extract_strided_slice %119 {offsets = [0, 0, 0], sizes = [8, 8, 4], strides = [1, 1, 1]} : vector<8x8x8xf32> to vector<8x8x4xf32>
    %121 = vector.extract_strided_slice %119 {offsets = [0, 0, 4], sizes = [8, 8, 4], strides = [1, 1, 1]} : vector<8x8x8xf32> to vector<8x8x4xf32>
    %122 = tpu.concatenate %120, %102, %121, %112 in 2 : vector<8x8x4xf32>, vector<8x8x4xf32>, vector<8x8x4xf32>, vector<8x8x4xf32> -> vector<8x8x16xf32>
    %123 = vector.shape_cast %117 : vector<8x8x16xf32> to vector<8x1x8x16xf32>
    %124 = vector.shape_cast %122 : vector<8x8x16xf32> to vector<8x1x8x16xf32>
    %125 = tpu.concatenate %123, %124 in 1 : vector<8x1x8x16xf32>, vector<8x1x8x16xf32> -> vector<8x2x8x16xf32>
    %126 = vector.shape_cast %125 : vector<8x2x8x16xf32> to vector<1x8x2x8x16xf32>
    %c0_56 = arith.constant 0 : index
    %c0_57 = arith.constant 0 : index
    %c0_58 = arith.constant 0 : index
    %c0_59 = arith.constant 0 : index
    %c0_60 = arith.constant 0 : index
    %127 = vector.load %arg6[%c0_56, %c0_57, %c0_58, %c0_59, %c0_60] : memref<1x8x2x8x16xf32, #tpu.memory_space<vmem>>, vector<1x8x2x8x16xf32>
    tpu.vector_store %arg6[%c0_56, %c0_57, %c0_58, %c0_59, %c0_60], %126 {strides = array<i32>} : memref<1x8x2x8x16xf32, #tpu.memory_space<vmem>>, vector<1x8x2x8x16xf32>,
    return
  }
  func.func @transform_0(%arg0: i32) -> (i32, i32, i32, i32, i32) {
    %c0_i32 = arith.constant 0 : i32
    %c0_i32_0 = arith.constant 0 : i32
    %c0_i32_1 = arith.constant 0 : i32
    %c0_i32_2 = arith.constant 0 : i32
    %c0_i32_3 = arith.constant 0 : i32
    return %arg0, %c0_i32, %c0_i32_0, %c0_i32_1, %c0_i32_2 : i32, i32, i32, i32, i32
  }
  func.func @transform_1(%arg0: i32) -> (i32, i32, i32, i32) {
    %c0_i32 = arith.constant 0 : i32
    %c0_i32_0 = arith.constant 0 : i32
    %c0_i32_1 = arith.constant 0 : i32
    %c0_i32_2 = arith.constant 0 : i32
    %c0_i32_3 = arith.constant 0 : i32
    return %c0_i32, %c0_i32_0, %c0_i32_1, %c0_i32_2 : i32, i32, i32, i32
  }
  func.func @transform_2(%arg0: i32) -> (i32, i32, i32, i32) {
    %c0_i32 = arith.constant 0 : i32
    %c0_i32_0 = arith.constant 0 : i32
    %c0_i32_1 = arith.constant 0 : i32
    %c0_i32_2 = arith.constant 0 : i32
    %c0_i32_3 = arith.constant 0 : i32
    return %c0_i32, %c0_i32_0, %c0_i32_1, %c0_i32_2 : i32, i32, i32, i32
  }
  func.func @transform_3(%arg0: i32) -> (i32, i32) {
    %c0_i32 = arith.constant 0 : i32
    %c0_i32_0 = arith.constant 0 : i32
    %c0_i32_1 = arith.constant 0 : i32
    return %c0_i32, %c0_i32_0 : i32, i32
  }
  func.func @transform_4(%arg0: i32) -> (i32, i32) {
    %c0_i32 = arith.constant 0 : i32
    %c0_i32_0 = arith.constant 0 : i32
    %c0_i32_1 = arith.constant 0 : i32
    return %c0_i32, %c0_i32_0 : i32, i32
  }
  func.func @transform_5(%arg0: i32) -> (i32, i32, i32, i32, i32) {
    %c0_i32 = arith.constant 0 : i32
    %c0_i32_0 = arith.constant 0 : i32
    %c0_i32_1 = arith.constant 0 : i32
    %c0_i32_2 = arith.constant 0 : i32
    %c0_i32_3 = arith.constant 0 : i32
    return %arg0, %c0_i32, %c0_i32_0, %c0_i32_1, %c0_i32_2 : i32, i32, i32, i32, i32
  }
}

</mosaic_0001>

<llo_original>
// kernel: tpu_custom_call.1
$region0: #{tpu_custom_call.1}
  #allocation0 [shape = 'u32[]', space=smem, size = 0x4, offset = 0x4, fixed_abs, tag = 'smem constant byte address 0x4 - core index']
  #allocation1 [shape = 'u32[144,128]{1,0:T(1,128)}', space=vmem, size = 0x12000, scoped, tag = 'internal scratch']
  %s0 = inlined_call_operand.hbm [shape: f32[2,8,2,8,8], index: 0, kind: input, shape index: {}]
  %s1 = inlined_call_operand.hbm [shape: bf16[2,2,16,8], index: 1, kind: input, shape index: {}]
  %s2 = inlined_call_operand.hbm [shape: bf16[2,2,32,4], index: 2, kind: input, shape index: {}]
  %s3 = inlined_call_operand.hbm [shape: f32[1,4], index: 3, kind: input, shape index: {}]
  %s4 = inlined_call_operand.hbm [shape: f32[1,4], index: 4, kind: input, shape index: {}]
  %s5 = inlined_call_operand.hbm [shape: f32[2,8,2,8,16], index: 5, kind: output, shape index: {}]
  %s6 = sld [smem:[#allocation0]]
  $region73: #{tpu_custom_call.1} parent=0
    _
  %s8 = ssub.s32 1, %s6
  %s9 = scalar_select 0, %s8, %s6
  $region1: #{tpu_custom_call.1} parent=0
    #allocation2 [shape = 'u8[131072]{0}', space=vmem, size = 0x20000, scoped, tag = 'input window, operand 0']
    #allocation3 [shape = 's32[2]{0}', space=sflag, size = 0x8, scoped, tag = 'scoped memory for tpu_custom_call.1']
    #allocation4 [shape = 's32[2]{0}', space=sflag, size = 0x8, scoped, tag = 'scoped memory for tpu_custom_call.1']
    #allocation5 [shape = 'u8[16384]{0}', space=vmem, size = 0x4000, scoped, tag = 'input window, operand 1, single buffered']
    #allocation6 [shape = 's32[1]{0}', space=sflag, size = 0x4, scoped, tag = 'scoped memory for tpu_custom_call.1']
    #allocation7 [shape = 'u8[32768]{0}', space=vmem, size = 0x8000, scoped, tag = 'input window, operand 2, single buffered']
    #allocation8 [shape = 'u8[512]{0}', space=vmem, size = 0x400, scoped, tag = 'input window, operand 3, single buffered']
    #allocation9 [shape = 's32[1]{0}', space=sflag, size = 0x4, scoped, tag = 'scoped memory for tpu_custom_call.1']
    #allocation10 [shape = 'u8[512]{0}', space=vmem, size = 0x400, scoped, tag = 'input window, operand 4, single buffered']
    #allocation11 [shape = 'u8[131072]{0}', space=vmem, size = 0x20000, scoped, tag = 'output window, operand 0']
    %10 = vsyncpa [#allocation3], 0
    %s11 = scalar_lea.sflag [#allocation3], 1
    %12 = vsyncpa %s11, 0
    %13 = vsyncpa [#allocation6], 0
    %14 = vsyncpa [#allocation9], 0
    %15 = vsyncpa [#allocation4], 0
    %s16 = scalar_lea.sflag [#allocation4], 1
    %17 = vsyncpa %s16, 0
    loop: start=0, step=1, limit=4
    $region2: #{tpu_custom_call.1} parent=1 // loop_pre_header
      _
    $region3: #{tpu_custom_call.1} parent=1 // loop_header
      %s19 = sphi 0, %s23
      %p20 = scmp.ge.s32.totalorder %s19, 4
      %s29 = sphi 0, %s31
      %s32 = sphi 0, %s29
      %s33 = sphi 0, %s32
      %s49 = sphi 0, %s33
      %s53 = sphi 0, %s53
      %s55 = sphi 0, %s53
      %s56 = sphi 0, %s55
      %s70 = sphi 0, %s56
      %s74 = sphi 0, %s74
      %s76 = sphi 0, %s74
      %s77 = sphi 0, %s76
      %s91 = sphi 0, %s77
      %s95 = sphi 0, %s95
      %s97 = sphi 0, %s95
      %s98 = sphi 0, %s97
      %s112 = sphi 0, %s98
      %s116 = sphi 0, %s116
      %s118 = sphi 0, %s116
      %s119 = sphi 0, %s118
      %s133 = sphi 0, %s119
      %s139 = sphi 0, %s141
      %s142 = sphi 0, %s139
      %s143 = sphi 0, %s142
      %s159 = sphi 0, %s143
    $region4: #{tpu_custom_call.1} parent=1 // loop_header_branch
      %22 = sbr.rel (%p20) target = $region8
    $region5: #{tpu_custom_call.1} parent=1 // loop_body
      %s24 = ssub.s32 %s19, 1
      %s25 = ssub.s32 %s19, 2
      %s26 = sadd.s32 %s19, 1
      %s27 = ssub.s32 %s19, %s26
      %p28 = scmp.eq.s32.totalorder %s27, 0
      %s30 = sadd.s32 %s29, 1
      %s31 = scalar_select %p28, %s29, %s30
      %p34 = pneg %p28
      %p35 = scmp.eq.s32.totalorder %s19, 1
      %p36 = por %p34, %p35
      %p37 = scmp.ne.s32.totalorder %s29, %s32
      %p38 = scmp.eq.s32.totalorder %s19, 0
      %p39 = por %p37, %p38
      %p40 = scmp.ne.s32.totalorder %s29, %s32
      %p41 = scmp.eq.s32.totalorder %s24, 1
      %p42 = por %p40, %p41
      %p43 = scmp.ne.s32.totalorder %s32, %s33
      %p44 = scmp.eq.s32.totalorder %s24, 0
      %p45 = por %p43, %p44
      %p46 = scmp.ne.s32.totalorder %s32, %s33
      %p47 = scmp.eq.s32.totalorder %s25, 1
      %p48 = por %p46, %p47
      %p50 = scmp.ne.s32.totalorder %s33, %s49
      %p51 = scmp.eq.s32.totalorder %s25, 0
      %p52 = por %p50, %p51
      %s54 = sadd.s32 %s53, 1
      %p57 = scmp.eq.s32.totalorder %s19, 1
      %p58 = scmp.ne.s32.totalorder %s53, %s55
      %p59 = scmp.eq.s32.totalorder %s19, 0
      %p60 = por %p58, %p59
      %p61 = scmp.ne.s32.totalorder %s53, %s55
      %p62 = scmp.eq.s32.totalorder %s24, 1
      %p63 = por %p61, %p62
      %p64 = scmp.ne.s32.totalorder %s55, %s56
      %p65 = scmp.eq.s32.totalorder %s24, 0
      %p66 = por %p64, %p65
      %p67 = scmp.ne.s32.totalorder %s55, %s56
      %p68 = scmp.eq.s32.totalorder %s25, 1
      %p69 = por %p67, %p68
      %p71 = scmp.ne.s32.totalorder %s56, %s70
      %p72 = scmp.eq.s32.totalorder %s25, 0
      %p73 = por %p71, %p72
      %s75 = sadd.s32 %s74, 1
      %p78 = scmp.eq.s32.totalorder %s19, 1
      %p79 = scmp.ne.s32.totalorder %s74, %s76
      %p80 = scmp.eq.s32.totalorder %s19, 0
      %p81 = por %p79, %p80
      %p82 = scmp.ne.s32.totalorder %s74, %s76
      %p83 = scmp.eq.s32.totalorder %s24, 1
      %p84 = por %p82, %p83
      %p85 = scmp.ne.s32.totalorder %s76, %s77
      %p86 = scmp.eq.s32.totalorder %s24, 0
      %p87 = por %p85, %p86
      %p88 = scmp.ne.s32.totalorder %s76, %s77
      %p89 = scmp.eq.s32.totalorder %s25, 1
      %p90 = por %p88, %p89
      %p92 = scmp.ne.s32.totalorder %s77, %s91
      %p93 = scmp.eq.s32.totalorder %s25, 0
      %p94 = por %p92, %p93
      %s96 = sadd.s32 %s95, 1
      %p99 = scmp.eq.s32.totalorder %s19, 1
      %p100 = scmp.ne.s32.totalorder %s95, %s97
      %p101 = scmp.eq.s32.totalorder %s19, 0
      %p102 = por %p100, %p101
      %p103 = scmp.ne.s32.totalorder %s95, %s97
      %p104 = scmp.eq.s32.totalorder %s24, 1
      %p105 = por %p103, %p104
      %p106 = scmp.ne.s32.totalorder %s97, %s98
      %p107 = scmp.eq.s32.totalorder %s24, 0
      %p108 = por %p106, %p107
      %p109 = scmp.ne.s32.totalorder %s97, %s98
      %p110 = scmp.eq.s32.totalorder %s25, 1
      %p111 = por %p109, %p110
      %p113 = scmp.ne.s32.totalorder %s98, %s112
      %p114 = scmp.eq.s32.totalorder %s25, 0
      %p115 = por %p113, %p114
      %s117 = sadd.s32 %s116, 1
      %p120 = scmp.eq.s32.totalorder %s19, 1
      %p121 = scmp.ne.s32.totalorder %s116, %s118
      %p122 = scmp.eq.s32.totalorder %s19, 0
      %p123 = por %p121, %p122
      %p124 = scmp.ne.s32.totalorder %s116, %s118
      %p125 = scmp.eq.s32.totalorder %s24, 1
      %p126 = por %p124, %p125
      %p127 = scmp.ne.s32.totalorder %s118, %s119
      %p128 = scmp.eq.s32.totalorder %s24, 0
      %p129 = por %p127, %p128
      %p130 = scmp.ne.s32.totalorder %s118, %s119
      %p131 = scmp.eq.s32.totalorder %s25, 1
      %p132 = por %p130, %p131
      %p134 = scmp.ne.s32.totalorder %s119, %s133
      %p135 = scmp.eq.s32.totalorder %s25, 0
      %p136 = por %p134, %p135
      %s137 = ssub.s32 %s19, %s26
      %p138 = scmp.eq.s32.totalorder %s137, 0
      %s140 = sadd.s32 %s139, 1
      %s141 = scalar_select %p138, %s139, %s140
      %p144 = pneg %p138
      %p145 = scmp.eq.s32.totalorder %s19, 1
      %p146 = por %p144, %p145
      %p147 = scmp.ne.s32.totalorder %s139, %s142
      %p148 = scmp.eq.s32.totalorder %s19, 0
      %p149 = por %p147, %p148
      %p150 = scmp.ne.s32.totalorder %s139, %s142
      %p151 = scmp.eq.s32.totalorder %s24, 1
      %p152 = por %p150, %p151
      %p153 = scmp.ne.s32.totalorder %s142, %s143
      %p154 = scmp.eq.s32.totalorder %s24, 0
      %p155 = por %p153, %p154
      %p156 = scmp.ne.s32.totalorder %s142, %s143
      %p157 = scmp.eq.s32.totalorder %s25, 1
      %p158 = por %p156, %p157
      %p160 = scmp.ne.s32.totalorder %s143, %s159
      %p161 = scmp.eq.s32.totalorder %s25, 0
      %p162 = por %p160, %p161
      %p163 = scmp.le.s32.totalorder 1, %s19
      %p164 = scmp.lt.s32.totalorder %s19, 3
      %p165 = pnand %p163, %p164
      %p166 = pneg %p165
      // Predicated region
      $region9: #{tpu_custom_call.1} parent=5 // pred_check
        _
      $region10: #{tpu_custom_call.1} parent=5 // pred_check_branch
        %168 = sbr.rel (%p165) target = $region12
      $region11: #{tpu_custom_call.1} parent=5 // pred_region
        %s169 = ssub.s32 %s19, 1
        // Predicated region
        $region13: #{tpu_custom_call.1} parent=11 // pred_check
          %p170 = pneg %p66
        $region14: #{tpu_custom_call.1} parent=11 // pred_check_branch
          %172 = sbr.rel (%p170) target = $region16
        $region15: #{tpu_custom_call.1} parent=11 // pred_region
          %s174 = ssub.s32 512, 512
          %175 = vsyncadd [#allocation6], %s174
          %s176 = sshll.u32 [#allocation5], 4
          %s177 = int_to_ptr.vmem [resolvable:$true] %s176
          %182 = dma.hbm_to_vmem [thread:$0]  %s1, 512, %s177, [#allocation6], 64, 64, 4
        $region16: #{tpu_custom_call.1} parent=11 // pred_fallthru
          _
        // Predicated region
        $region17: #{tpu_custom_call.1} parent=11 // pred_check
          %p183 = pneg %p87
        $region18: #{tpu_custom_call.1} parent=11 // pred_check_branch
          %185 = sbr.rel (%p183) target = $region20
        $region19: #{tpu_custom_call.1} parent=11 // pred_region
          %s187 = ssub.s32 1024, 1024
          %188 = vsyncadd [#allocation6], %s187
          %s189 = sshll.u32 [#allocation7], 4
          %s190 = int_to_ptr.vmem [resolvable:$true] %s189
          %195 = dma.hbm_to_vmem [thread:$0]  %s2, 1024, %s190, [#allocation6], 64, 64, 4
        $region20: #{tpu_custom_call.1} parent=11 // pred_fallthru
          _
        // Predicated region
        $region21: #{tpu_custom_call.1} parent=11 // pred_check
          %p196 = pneg %p108
        $region22: #{tpu_custom_call.1} parent=11 // pred_check_branch
          %198 = sbr.rel (%p196) target = $region24
        $region23: #{tpu_custom_call.1} parent=11 // pred_region
          %s200 = ssub.s32 16, 16
          %201 = vsyncadd [#allocation9], %s200
          %s203 = sshll.u32 [#allocation8], 4
          %s204 = int_to_ptr.vmem [resolvable:$true] %s203
          %206 = dma.hbm_to_vmem [thread:$0]  %s3, 16, %s204, [#allocation9]
        $region24: #{tpu_custom_call.1} parent=11 // pred_fallthru
          _
        // Predicated region
        $region25: #{tpu_custom_call.1} parent=11 // pred_check
          %p207 = pneg %p129
        $region26: #{tpu_custom_call.1} parent=11 // pred_check_branch
          %209 = sbr.rel (%p207) target = $region28
        $region27: #{tpu_custom_call.1} parent=11 // pred_region
          %s211 = ssub.s32 16, 16
          %212 = vsyncadd [#allocation9], %s211
          %s214 = sshll.u32 [#allocation10], 4
          %s215 = int_to_ptr.vmem [resolvable:$true] %s214
          %217 = dma.hbm_to_vmem [thread:$0]  %s4, 16, %s215, [#allocation9]
        $region28: #{tpu_custom_call.1} parent=11 // pred_fallthru
          _
      $region12: #{tpu_custom_call.1} parent=5 // pred_fallthru
        _
      %p218 = scmp.lt.s32.totalorder %s19, 2
      // Predicated region
      $region29: #{tpu_custom_call.1} parent=5 // pred_check
        %p219 = pneg %p218
      $region30: #{tpu_custom_call.1} parent=5 // pred_check_branch
        %221 = sbr.rel (%p219) target = $region32
      $region31: #{tpu_custom_call.1} parent=5 // pred_region
        // Predicated region
        $region33: #{tpu_custom_call.1} parent=31 // pred_check
          %p222 = pneg %p39
        $region34: #{tpu_custom_call.1} parent=31 // pred_check_branch
          %224 = sbr.rel (%p222) target = $region36
        $region35: #{tpu_custom_call.1} parent=31 // pred_region
          %s225 = sand.u32 %s29, 1
          %s226 = scalar_lea.sflag [#allocation3], %s225
          %s227 = sand.u32 %s29, 1
          %s228 = smul.addr %s227, 128
          %s229 = scalar_lea.vmem [#allocation2], %s228
          %s231 = ssub.s32 2048, 2048
          %232 = vsyncadd %s226, %s231
          %s233 = smul.addr %s19, 16
          %s234 = smul.addr %s233, 128
          %s235 = scalar_lea.hbm %s0, %s234
          %s236 = sshll.u32 %s229, 4
          %s237 = int_to_ptr.vmem [resolvable:$true] %s236
          %242 = dma.hbm_to_vmem [thread:$0]  %s235, 2048, %s237, %s226, 128, 128, 8
        $region36: #{tpu_custom_call.1} parent=31 // pred_fallthru
          _
      $region32: #{tpu_custom_call.1} parent=5 // pred_fallthru
        _
      %p243 = scmp.le.s32.totalorder 1, %s19
      %p244 = scmp.lt.s32.totalorder %s19, 3
      %p245 = pnand %p243, %p244
      %p246 = pneg %p245
      // Predicated region
      $region37: #{tpu_custom_call.1} parent=5 // pred_check
        _
      $region38: #{tpu_custom_call.1} parent=5 // pred_check_branch
        %248 = sbr.rel (%p245) target = $region40
      $region39: #{tpu_custom_call.1} parent=5 // pred_region
        %s249 = ssub.s32 %s19, 1
        %s250 = sand.u32 %s32, 1
        %s251 = scalar_lea.sflag [#allocation3], %s250
        %s252 = sand.u32 %s32, 1
        %s253 = smul.addr %s252, 128
        %s254 = scalar_lea.vmem [#allocation2], %s253
        // Predicated region
        $region41: #{tpu_custom_call.1} parent=39 // pred_check
          %p255 = pneg %p45
        $region42: #{tpu_custom_call.1} parent=39 // pred_check_branch
          %257 = sbr.rel (%p255) target = $region44
        $region43: #{tpu_custom_call.1} parent=39 // pred_region
          %258 = dma.done %s251, 2048
        $region44: #{tpu_custom_call.1} parent=39 // pred_fallthru
          _
        // Predicated region
        $region45: #{tpu_custom_call.1} parent=39 // pred_check
          %p259 = pneg %p66
        $region46: #{tpu_custom_call.1} parent=39 // pred_check_branch
          %261 = sbr.rel (%p259) target = $region48
        $region47: #{tpu_custom_call.1} parent=39 // pred_region
          %262 = dma.done [#allocation6], 512
        $region48: #{tpu_custom_call.1} parent=39 // pred_fallthru
          _
        // Predicated region
        $region49: #{tpu_custom_call.1} parent=39 // pred_check
          %p263 = pneg %p87
        $region50: #{tpu_custom_call.1} parent=39 // pred_check_branch
          %265 = sbr.rel (%p263) target = $region52
        $region51: #{tpu_custom_call.1} parent=39 // pred_region
          %266 = dma.done [#allocation6], 1024
        $region52: #{tpu_custom_call.1} parent=39 // pred_fallthru
          _
        // Predicated region
        $region53: #{tpu_custom_call.1} parent=39 // pred_check
          %p267 = pneg %p108
        $region54: #{tpu_custom_call.1} parent=39 // pred_check_branch
          %269 = sbr.rel (%p267) target = $region56
        $region55: #{tpu_custom_call.1} parent=39 // pred_region
          %270 = dma.done [#allocation9], 16
        $region56: #{tpu_custom_call.1} parent=39 // pred_fallthru
          _
        // Predicated region
        $region57: #{tpu_custom_call.1} parent=39 // pred_check
          %p271 = pneg %p129
        $region58: #{tpu_custom_call.1} parent=39 // pred_check_branch
          %273 = sbr.rel (%p271) target = $region60
        $region59: #{tpu_custom_call.1} parent=39 // pred_region
          %274 = dma.done [#allocation9], 16
        $region60: #{tpu_custom_call.1} parent=39 // pred_fallthru
          _
        %s275 = sand.u32 %s32, 1
        %s276 = scalar_lea.sflag [#allocation3], %s275
        %s277 = sand.u32 %s32, 1
        %s278 = smul.addr %s277, 128
        %s279 = scalar_lea.vmem [#allocation2], %s278
        %p280 = pneg %p45
        %p281 = pneg %p42
        %p282 = pneg %p66
        %p283 = pneg %p63
        %p284 = pneg %p87
        %p285 = pneg %p84
        %p286 = pneg %p108
        %p287 = pneg %p105
        %p288 = pneg %p129
        %p289 = pneg %p126
        %p290 = pneg %p155
        %p291 = pneg %p152
        %s292 = sand.u32 %s142, 1
        %s293 = scalar_lea.sflag [#allocation4], %s292
        %s294 = sand.u32 %s142, 1
        %s295 = smul.addr %s294, 128
        %s296 = scalar_lea.vmem [#allocation11], %s295
        %v298 = vld [vmem:[%s254] sm:$0xff]
        %v299 = vld [vmem:[%s254 + $0x8] sm:$0xff]
        %v300 = vld [vmem:[%s254 + $0x10] sm:$0xff]
        %v301 = vld [vmem:[%s254 + $0x18] sm:$0xff]
        %v302 = vld [vmem:[%s254 + $0x20] sm:$0xff]
        %v303 = vld [vmem:[%s254 + $0x28] sm:$0xff]
        %v304 = vld [vmem:[%s254 + $0x30] sm:$0xff]
        %v305 = vld [vmem:[%s254 + $0x38] sm:$0xff]
        %v306 = vld [vmem:[%s254 + $0x40] sm:$0xff]
        %v307 = vld [vmem:[%s254 + $0x48] sm:$0xff]
        %v308 = vld [vmem:[%s254 + $0x50] sm:$0xff]
        %v309 = vld [vmem:[%s254 + $0x58] sm:$0xff]
        %v310 = vld [vmem:[%s254 + $0x60] sm:$0xff]
        %v311 = vld [vmem:[%s254 + $0x68] sm:$0xff]
        %v312 = vld [vmem:[%s254 + $0x70] sm:$0xff]
        %v313 = vld [vmem:[%s254 + $0x78] sm:$0xff]
        %vm314 = vcmp.ge.f32.partialorder %v298, 0.0
        %vm315 = vcmp.ge.f32.partialorder %v300, 0.0
        %vm316 = vcmp.ge.f32.partialorder %v302, 0.0
        %vm317 = vcmp.ge.f32.partialorder %v304, 0.0
        %vm318 = vcmp.ge.f32.partialorder %v306, 0.0
        %vm319 = vcmp.ge.f32.partialorder %v308, 0.0
        %vm320 = vcmp.ge.f32.partialorder %v310, 0.0
        %vm321 = vcmp.ge.f32.partialorder %v312, 0.0
        %v322 = vmul.f32 %v298, 0.2
        %v323 = vmul.f32 %v300, 0.2
        %v324 = vmul.f32 %v302, 0.2
        %v325 = vmul.f32 %v304, 0.2
        %v326 = vmul.f32 %v306, 0.2
        %v327 = vmul.f32 %v308, 0.2
        %v328 = vmul.f32 %v310, 0.2
        %v329 = vmul.f32 %v312, 0.2
        %v330 = vsel %vm314, %v298, %v322
        %v331 = vsel %vm315, %v300, %v323
        %v332 = vsel %vm316, %v302, %v324
        %v333 = vsel %vm317, %v304, %v325
        %v334 = vsel %vm318, %v306, %v326
        %v335 = vsel %vm319, %v308, %v327
        %v336 = vsel %vm320, %v310, %v328
        %v337 = vsel %vm321, %v312, %v329
        %v338 = vpack.c.bf16 %v330, %v330
        %v339 = vpack.c.bf16 %v331, %v331
        %v340 = vpack.c.bf16 %v332, %v332
        %v341 = vpack.c.bf16 %v333, %v333
        %v342 = vpack.c.bf16 %v334, %v334
        %v343 = vpack.c.bf16 %v335, %v335
        %v344 = vpack.c.bf16 %v336, %v336
        %v345 = vpack.c.bf16 %v337, %v337
        %vm346 = vcmp.ge.f32.partialorder %v299, 0.0
        %vm347 = vcmp.ge.f32.partialorder %v301, 0.0
        %vm348 = vcmp.ge.f32.partialorder %v303, 0.0
        %vm349 = vcmp.ge.f32.partialorder %v305, 0.0
        %vm350 = vcmp.ge.f32.partialorder %v307, 0.0
        %vm351 = vcmp.ge.f32.partialorder %v309, 0.0
        %vm352 = vcmp.ge.f32.partialorder %v311, 0.0
        %vm353 = vcmp.ge.f32.partialorder %v313, 0.0
        %v354 = vmul.f32 %v299, 0.2
        %v355 = vmul.f32 %v301, 0.2
        %v356 = vmul.f32 %v303, 0.2
        %v357 = vmul.f32 %v305, 0.2
        %v358 = vmul.f32 %v307, 0.2
        %v359 = vmul.f32 %v309, 0.2
        %v360 = vmul.f32 %v311, 0.2
        %v361 = vmul.f32 %v313, 0.2
        %v362 = vsel %vm346, %v299, %v354
        %v363 = vsel %vm347, %v301, %v355
        %v364 = vsel %vm348, %v303, %v356
        %v365 = vsel %vm349, %v305, %v357
        %v366 = vsel %vm350, %v307, %v358
        %v367 = vsel %vm351, %v309, %v359
        %v368 = vsel %vm352, %v311, %v360
        %v369 = vsel %vm353, %v313, %v361
        %v370 = vpack.c.bf16 %v362, %v362
        %v371 = vpack.c.bf16 %v363, %v363
        %v372 = vpack.c.bf16 %v364, %v364
        %v373 = vpack.c.bf16 %v365, %v365
        %v374 = vpack.c.bf16 %v366, %v366
        %v375 = vpack.c.bf16 %v367, %v367
        %v376 = vpack.c.bf16 %v368, %v368
        %v377 = vpack.c.bf16 %v369, %v369
        %386 = vrot.lane.b32.xlu0 %v370, 124
        %v387 = vpop.permute.xlu0 %386
        %388 = vrot.lane.b32.xlu0 %v371, 124
        %v389 = vpop.permute.xlu0 %388
        %390 = vrot.lane.b32.xlu0 %v372, 124
        %v391 = vpop.permute.xlu0 %390
        %392 = vrot.lane.b32.xlu0 %v373, 124
        %v393 = vpop.permute.xlu0 %392
        %394 = vrot.lane.b32.xlu0 %v374, 124
        %v395 = vpop.permute.xlu0 %394
        %396 = vrot.lane.b32.xlu0 %v375, 124
        %v397 = vpop.permute.xlu0 %396
        %398 = vrot.lane.b32.xlu0 %v376, 124
        %v399 = vpop.permute.xlu0 %398
        %400 = vrot.lane.b32.xlu0 %v377, 124
        %v401 = vpop.permute.xlu0 %400
        %v403 = vshrl.u32 0, 16
        %v405 = vrot.slane %v403, 7
        %v406 = vshll.u32 0, 16
        %v408 = vor.u32 %v405, %v406
        %v410 = vshrl.u32 %v387, 16
        %v412 = vrot.slane %v410, 7
        %v413 = vshll.u32 %v387, 16
        %v415 = vor.u32 %v412, %v413
        %v417 = vshrl.u32 %v389, 16
        %v419 = vrot.slane %v417, 7
        %v420 = vshll.u32 %v389, 16
        %v422 = vor.u32 %v419, %v420
        %v424 = vshrl.u32 %v391, 16
        %v426 = vrot.slane %v424, 7
        %v427 = vshll.u32 %v391, 16
        %v429 = vor.u32 %v426, %v427
        %v431 = vshrl.u32 %v393, 16
        %v433 = vrot.slane %v431, 7
        %v434 = vshll.u32 %v393, 16
        %v436 = vor.u32 %v433, %v434
        %v438 = vshrl.u32 %v395, 16
        %v440 = vrot.slane %v438, 7
        %v441 = vshll.u32 %v395, 16
        %v443 = vor.u32 %v440, %v441
        %v445 = vshrl.u32 %v397, 16
        %v447 = vrot.slane %v445, 7
        %v448 = vshll.u32 %v397, 16
        %v450 = vor.u32 %v447, %v448
        %v452 = vshrl.u32 %v399, 16
        %v454 = vrot.slane %v452, 7
        %v455 = vshll.u32 %v399, 16
        %v457 = vor.u32 %v454, %v455
        %v459 = vshrl.u32 %v401, 16
        %v461 = vrot.slane %v459, 7
        %v462 = vshll.u32 %v401, 16
        %v464 = vor.u32 %v461, %v462
        %vm474 = vcmask 1040384
        %vm475 = vsmask.f32 256
        %vm476 = vmand %vm474, %vm475
        %v477 = vsel %vm476, 0, %v408
        %v478 = vsel %vm476, 0, %v415
        %v479 = vsel %vm476, 0, %v422
        %v480 = vsel %vm476, 0, %v429
        %v481 = vsel %vm476, 0, %v436
        %v482 = vsel %vm476, 0, %v443
        %v483 = vsel %vm476, 0, %v450
        %v484 = vsel %vm476, 0, %v457
        %v485 = vsel %vm476, 0, %v464
        %vm486 = vcmask 1043456
        %v488 = vsel %vm486, %v370, 0
        %v490 = vsel %vm486, %v371, 0
        %v492 = vsel %vm486, %v372, 0
        %v494 = vsel %vm486, %v373, 0
        %v496 = vsel %vm486, %v374, 0
        %v498 = vsel %vm486, %v375, 0
        %v500 = vsel %vm486, %v376, 0
        %v502 = vsel %vm486, %v377, 0
        %v504 = vshrl.u32 %v338, 16
        %v506 = vrot.slane %v504, 7
        %v507 = vshll.u32 %v338, 16
        %v509 = vor.u32 %v506, %v507
        %v511 = vshrl.u32 %v339, 16
        %v513 = vrot.slane %v511, 7
        %v514 = vshll.u32 %v339, 16
        %v516 = vor.u32 %v513, %v514
        %v518 = vshrl.u32 %v340, 16
        %v520 = vrot.slane %v518, 7
        %v521 = vshll.u32 %v340, 16
        %v523 = vor.u32 %v520, %v521
        %v525 = vshrl.u32 %v341, 16
        %v527 = vrot.slane %v525, 7
        %v528 = vshll.u32 %v341, 16
        %v530 = vor.u32 %v527, %v528
        %v532 = vshrl.u32 %v342, 16
        %v534 = vrot.slane %v532, 7
        %v535 = vshll.u32 %v342, 16
        %v537 = vor.u32 %v534, %v535
        %v539 = vshrl.u32 %v343, 16
        %v541 = vrot.slane %v539, 7
        %v542 = vshll.u32 %v343, 16
        %v544 = vor.u32 %v541, %v542
        %v546 = vshrl.u32 %v344, 16
        %v548 = vrot.slane %v546, 7
        %v549 = vshll.u32 %v344, 16
        %v551 = vor.u32 %v548, %v549
        %v553 = vshrl.u32 %v345, 16
        %v555 = vrot.slane %v553, 7
        %v556 = vshll.u32 %v345, 16
        %v558 = vor.u32 %v555, %v556
        %559 = vrot.lane.b32.xlu0 %v509, 124
        %v560 = vpop.permute.xlu0 %559
        %561 = vrot.lane.b32.xlu0 %v516, 124
        %v562 = vpop.permute.xlu0 %561
        %563 = vrot.lane.b32.xlu0 %v523, 124
        %v564 = vpop.permute.xlu0 %563
        %565 = vrot.lane.b32.xlu0 %v530, 124
        %v566 = vpop.permute.xlu0 %565
        %567 = vrot.lane.b32.xlu0 %v537, 124
        %v568 = vpop.permute.xlu0 %567
        %569 = vrot.lane.b32.xlu0 %v544, 124
        %v570 = vpop.permute.xlu0 %569
        %571 = vrot.lane.b32.xlu0 %v551, 124
        %v572 = vpop.permute.xlu0 %571
        %573 = vrot.lane.b32.xlu0 %v558, 124
        %v574 = vpop.permute.xlu0 %573
        %575 = vrot.lane.b32.xlu0 %v408, 124
        %v576 = vpop.permute.xlu0 %575
        %v586 = vsel %vm476, 0, %v560
        %v587 = vsel %vm476, 0, %v562
        %v588 = vsel %vm476, 0, %v564
        %v589 = vsel %vm476, 0, %v566
        %v590 = vsel %vm476, 0, %v568
        %v591 = vsel %vm476, 0, %v570
        %v592 = vsel %vm476, 0, %v572
        %v593 = vsel %vm476, 0, %v574
        %v594 = vsel %vm476, 0, %v576
        %v595 = vsel %vm486, %v338, 0
        %v596 = vsel %vm486, %v339, 0
        %v597 = vsel %vm486, %v340, 0
        %v598 = vsel %vm486, %v341, 0
        %v599 = vsel %vm486, %v342, 0
        %v600 = vsel %vm486, %v343, 0
        %v601 = vsel %vm486, %v344, 0
        %v602 = vsel %vm486, %v345, 0
        %612 = vrot.lane.b32.xlu0 0, 4
        %v613 = vpop.permute.xlu0 %612
        %614 = vrot.lane.b32.xlu0 %v488, 4
        %v615 = vpop.permute.xlu0 %614
        %616 = vrot.lane.b32.xlu0 %v490, 4
        %v617 = vpop.permute.xlu0 %616
        %618 = vrot.lane.b32.xlu0 %v492, 4
        %v619 = vpop.permute.xlu0 %618
        %620 = vrot.lane.b32.xlu0 %v494, 4
        %v621 = vpop.permute.xlu0 %620
        %622 = vrot.lane.b32.xlu0 %v496, 4
        %v623 = vpop.permute.xlu0 %622
        %624 = vrot.lane.b32.xlu0 %v498, 4
        %v625 = vpop.permute.xlu0 %624
        %626 = vrot.lane.b32.xlu0 %v500, 4
        %v627 = vpop.permute.xlu0 %626
        %628 = vrot.lane.b32.xlu0 %v502, 4
        %v629 = vpop.permute.xlu0 %628
        %639 = vrot.lane.b32.xlu0 %v586, 8
        %v640 = vpop.permute.xlu0 %639
        %641 = vrot.lane.b32.xlu0 %v587, 8
        %v642 = vpop.permute.xlu0 %641
        %643 = vrot.lane.b32.xlu0 %v588, 8
        %v644 = vpop.permute.xlu0 %643
        %645 = vrot.lane.b32.xlu0 %v589, 8
        %v646 = vpop.permute.xlu0 %645
        %647 = vrot.lane.b32.xlu0 %v590, 8
        %v648 = vpop.permute.xlu0 %647
        %649 = vrot.lane.b32.xlu0 %v591, 8
        %v650 = vpop.permute.xlu0 %649
        %651 = vrot.lane.b32.xlu0 %v592, 8
        %v652 = vpop.permute.xlu0 %651
        %653 = vrot.lane.b32.xlu0 %v593, 8
        %v654 = vpop.permute.xlu0 %653
        %655 = vrot.lane.b32.xlu0 %v594, 8
        %v656 = vpop.permute.xlu0 %655
        %665 = vrot.lane.b32.xlu0 %v595, 12
        %v666 = vpop.permute.xlu0 %665
        %667 = vrot.lane.b32.xlu0 %v596, 12
        %v668 = vpop.permute.xlu0 %667
        %669 = vrot.lane.b32.xlu0 %v597, 12
        %v670 = vpop.permute.xlu0 %669
        %671 = vrot.lane.b32.xlu0 %v598, 12
        %v672 = vpop.permute.xlu0 %671
        %673 = vrot.lane.b32.xlu0 %v599, 12
        %v674 = vpop.permute.xlu0 %673
        %675 = vrot.lane.b32.xlu0 %v600, 12
        %v676 = vpop.permute.xlu0 %675
        %677 = vrot.lane.b32.xlu0 %v601, 12
        %v678 = vpop.permute.xlu0 %677
        %679 = vrot.lane.b32.xlu0 %v602, 12
        %v680 = vpop.permute.xlu0 %679
        %681 = vrot.lane.b32.xlu0 0, 12
        %v682 = vpop.permute.xlu0 %681
        %vm683 = vcmask 31744
        %v686 = vsel %vm683, %v477, %v613
        %v689 = vsel %vm683, %v478, %v615
        %v692 = vsel %vm683, %v479, %v617
        %v695 = vsel %vm683, %v480, %v619
        %v698 = vsel %vm683, %v481, %v621
        %v701 = vsel %vm683, %v482, %v623
        %v704 = vsel %vm683, %v483, %v625
        %v707 = vsel %vm683, %v484, %v627
        %v710 = vsel %vm683, %v485, %v629
        %vm711 = vcmask 64512
        %v713 = vsel %vm711, %v686, %v640
        %v715 = vsel %vm711, %v689, %v642
        %v717 = vsel %vm711, %v692, %v644
        %v719 = vsel %vm711, %v695, %v646
        %v721 = vsel %vm711, %v698, %v648
        %v723 = vsel %vm711, %v701, %v650
        %v725 = vsel %vm711, %v704, %v652
        %v727 = vsel %vm711, %v707, %v654
        %v729 = vsel %vm711, %v710, %v656
        %vm730 = vcmask 97280
        %v732 = vsel %vm730, %v713, %v666
        %v734 = vsel %vm730, %v715, %v668
        %v736 = vsel %vm730, %v717, %v670
        %v738 = vsel %vm730, %v719, %v672
        %v740 = vsel %vm730, %v721, %v674
        %v742 = vsel %vm730, %v723, %v676
        %v744 = vsel %vm730, %v725, %v678
        %v746 = vsel %vm730, %v727, %v680
        %v748 = vsel %vm730, %v729, %v682
        %v749 = vld [vmem:[#allocation5] sm:$0xf]
        %v750 = vld [vmem:[#allocation5 + $0x4] sm:$0xf]
        %v759 = vunpack.c.l.b16 %v732
        %v760 = vunpack.c.h.b16 %v732
        %v761 = vunpack.c.l.b16 %v734
        %v762 = vunpack.c.h.b16 %v734
        %v763 = vunpack.c.l.b16 %v736
        %v764 = vunpack.c.h.b16 %v736
        %v765 = vunpack.c.l.b16 %v738
        %v766 = vunpack.c.h.b16 %v738
        %v767 = vunpack.c.l.b16 %v740
        %v768 = vunpack.c.h.b16 %v740
        %v769 = vunpack.c.l.b16 %v742
        %v770 = vunpack.c.h.b16 %v742
        %v771 = vunpack.c.l.b16 %v744
        %v772 = vunpack.c.h.b16 %v744
        %v773 = vunpack.c.l.b16 %v746
        %v774 = vunpack.c.h.b16 %v746
        %v775 = vpack.c.b16 %v759, %v759
        %v776 = vpack.c.b16 %v760, %v760
        %v777 = vpack.c.b16 %v761, %v761
        %v778 = vpack.c.b16 %v762, %v762
        %v779 = vpack.c.b16 %v763, %v763
        %v780 = vpack.c.b16 %v764, %v764
        %v781 = vpack.c.b16 %v765, %v765
        %v782 = vpack.c.b16 %v766, %v766
        %v783 = vpack.c.b16 %v767, %v767
        %v784 = vpack.c.b16 %v768, %v768
        %v785 = vpack.c.b16 %v769, %v769
        %v786 = vpack.c.b16 %v770, %v770
        %v787 = vpack.c.b16 %v771, %v771
        %v788 = vpack.c.b16 %v772, %v772
        %v789 = vpack.c.b16 %v773, %v773
        %v790 = vpack.c.b16 %v774, %v774
        %vm791 = vsmask.f32 3328
        %vm792 = vsmask.f32 7440
        %vm793 = vmor %vm791, %vm792
        %v795 = vshrl.u32 %v775, 16
        %v797 = vrot.slane %v795, 4
        %v798 = vshll.u32 %v775, 16
        %v800 = vrot.slane %v798, 5
        %v801 = vor.u32 %v797, %v800
        %v802 = vrot.slane %v801, 4
        %v804 = vshll.u32 %v776, 16
        %v806 = vrot.slane %v804, 5
        %v807 = vsel %vm793, %v802, %v806
        %v809 = vshrl.u32 %v777, 16
        %v811 = vrot.slane %v809, 4
        %v812 = vshll.u32 %v777, 16
        %v814 = vrot.slane %v812, 5
        %v815 = vor.u32 %v811, %v814
        %v816 = vrot.slane %v815, 4
        %v818 = vshll.u32 %v778, 16
        %v820 = vrot.slane %v818, 5
        %v821 = vsel %vm793, %v816, %v820
        %v823 = vshrl.u32 %v779, 16
        %v825 = vrot.slane %v823, 4
        %v826 = vshll.u32 %v779, 16
        %v828 = vrot.slane %v826, 5
        %v829 = vor.u32 %v825, %v828
        %v830 = vrot.slane %v829, 4
        %v832 = vshll.u32 %v780, 16
        %v834 = vrot.slane %v832, 5
        %v835 = vsel %vm793, %v830, %v834
        %v837 = vshrl.u32 %v781, 16
        %v839 = vrot.slane %v837, 4
        %v840 = vshll.u32 %v781, 16
        %v842 = vrot.slane %v840, 5
        %v843 = vor.u32 %v839, %v842
        %v844 = vrot.slane %v843, 4
        %v846 = vshll.u32 %v782, 16
        %v848 = vrot.slane %v846, 5
        %v849 = vsel %vm793, %v844, %v848
        %v851 = vshrl.u32 %v783, 16
        %v853 = vrot.slane %v851, 4
        %v854 = vshll.u32 %v783, 16
        %v856 = vrot.slane %v854, 5
        %v857 = vor.u32 %v853, %v856
        %v858 = vrot.slane %v857, 4
        %v860 = vshll.u32 %v784, 16
        %v862 = vrot.slane %v860, 5
        %v863 = vsel %vm793, %v858, %v862
        %v865 = vshrl.u32 %v785, 16
        %v867 = vrot.slane %v865, 4
        %v868 = vshll.u32 %v785, 16
        %v870 = vrot.slane %v868, 5
        %v871 = vor.u32 %v867, %v870
        %v872 = vrot.slane %v871, 4
        %v874 = vshll.u32 %v786, 16
        %v876 = vrot.slane %v874, 5
        %v877 = vsel %vm793, %v872, %v876
        %v879 = vshrl.u32 %v787, 16
        %v881 = vrot.slane %v879, 4
        %v882 = vshll.u32 %v787, 16
        %v884 = vrot.slane %v882, 5
        %v885 = vor.u32 %v881, %v884
        %v886 = vrot.slane %v885, 4
        %v888 = vshll.u32 %v788, 16
        %v890 = vrot.slane %v888, 5
        %v891 = vsel %vm793, %v886, %v890
        %v893 = vshrl.u32 %v789, 16
        %v895 = vrot.slane %v893, 4
        %v896 = vshll.u32 %v789, 16
        %v898 = vrot.slane %v896, 5
        %v899 = vor.u32 %v895, %v898
        %v900 = vrot.slane %v899, 4
        %v902 = vshll.u32 %v790, 16
        %v904 = vrot.slane %v902, 5
        %v905 = vsel %vm793, %v900, %v904
        %s906 = scalar_lea.vmem [#allocation5], 8
        %v907 = vld [vmem:[%s906] sm:$0xf]
        %v908 = vld [vmem:[%s906 + $0x4] sm:$0xf]
        %v909 = vunpack.c.l.b16 %v807
        %v910 = vunpack.c.l.b16 %v821
        %v911 = vunpack.c.l.b16 %v835
        %v912 = vunpack.c.l.b16 %v849
        %v913 = vunpack.c.l.b16 %v863
        %v914 = vunpack.c.l.b16 %v877
        %v915 = vunpack.c.l.b16 %v891
        %v916 = vunpack.c.l.b16 %v905
        %v917 = vpack.c.b16 %v910, %v909
        %v918 = vpack.c.b16 %v912, %v911
        %v919 = vpack.c.b16 %v914, %v913
        %v920 = vpack.c.b16 %v916, %v915
        %v923 = vunpack.c.l.b16 %v907
        %v924 = vunpack.c.l.b16 %v908
        %v925 = vpack.c.b16 %v924, %v923
        %vm927 = vcmask 130048
        %v929 = vsel %vm927, %v917, 0
        %v932 = vsel %vm927, %v918, 0
        %v935 = vsel %vm927, %v919, 0
        %v938 = vsel %vm927, %v920, 0
        %940 = vmatprep.subr.bf16.mxu0 0
        %941 = vmatpush1.bf16.msra.mxu0 %v925
        %942 = vmatprep.subr.bf16.mxu0 0
        %943 = vmatpush1.bf16.msra.mxu0 0
        %944 = vmatprep.subr.bf16.mxu0 0
        %945 = vmatpush1.bf16.msra.mxu0 0
        %946 = vmatprep.subr.bf16.mxu0 0
        %947 = vmatpush1.bf16.msra.mxu0 0
        %948 = vmatprep.subr.bf16.mxu0 0
        %949 = vmatpush1.bf16.msra.mxu0 0
        %950 = vmatprep.subr.bf16.mxu0 0
        %951 = vmatpush1.bf16.msra.mxu0 0
        %952 = vmatprep.subr.bf16.mxu0 0
        %953 = vmatpush1.bf16.msra.mxu0 0
        %954 = vmatprep.subr.bf16.mxu0 0
        %955 = vmatpush1.bf16.msra.mxu0 0
        %956 = vmatprep.subr.bf16.mxu0 0
        %957 = vmatpush1.bf16.msra.mxu0 0
        %958 = vmatprep.subr.bf16.mxu0 0
        %959 = vmatpush1.bf16.msra.mxu0 0
        %960 = vmatprep.subr.bf16.mxu0 0
        %961 = vmatpush1.bf16.msra.mxu0 0
        %962 = vmatprep.subr.bf16.mxu0 0
        %963 = vmatpush1.bf16.msra.mxu0 0
        %964 = vmatprep.subr.bf16.mxu0 0
        %965 = vmatpush1.bf16.msra.mxu0 0
        %966 = vmatprep.subr.bf16.mxu0 0
        %967 = vmatpush1.bf16.msra.mxu0 0
        %968 = vmatprep.subr.bf16.mxu0 0
        %969 = vmatpush1.bf16.msra.mxu0 0
        %970 = vmatprep.subr.bf16.mxu0 0
        %971 = vmatpush1.bf16.msra.mxu0 0
        %972 = vmatprep.mubr.bf16.mxu0 0
        %973 = vmatmul.mubr.bf16.gmra.mrb[0].mxu0 %v929
        %v974 = vpop.f32.mrb[0].mxu0
        %v975 = vadd.f32 0.0, %v974
        %v976 = vpop.f32.mrb[0].mxu0
        %v977 = vpop.f32.mrb[0].mxu0
        %v978 = vadd.f32 0.0, %v977
        %v979 = vpop.f32.mrb[0].mxu0
        %980 = vmatprep.mubr.bf16.mxu0 0
        %981 = vmatmul.mubr.bf16.gmra.mrb[0].mxu0 %v932
        %v982 = vpop.f32.mrb[0].mxu0
        %v983 = vadd.f32 0.0, %v982
        %v984 = vpop.f32.mrb[0].mxu0
        %v985 = vpop.f32.mrb[0].mxu0
        %v986 = vadd.f32 0.0, %v985
        %v987 = vpop.f32.mrb[0].mxu0
        %988 = vmatprep.mubr.bf16.mxu0 0
        %989 = vmatmul.mubr.bf16.gmra.mrb[0].mxu0 %v935
        %v990 = vpop.f32.mrb[0].mxu0
        %v991 = vadd.f32 0.0, %v990
        %v992 = vpop.f32.mrb[0].mxu0
        %v993 = vpop.f32.mrb[0].mxu0
        %v994 = vadd.f32 0.0, %v993
        %v995 = vpop.f32.mrb[0].mxu0
        %996 = vmatprep.mubr.bf16.mxu0 0
        %997 = vmatmul.mubr.bf16.gmra.mrb[0].mxu0 %v938
        %v998 = vpop.f32.mrb[0].mxu0
        %v999 = vadd.f32 0.0, %v998
        %v1000 = vpop.f32.mrb[0].mxu0
        %v1001 = vpop.f32.mrb[0].mxu0
        %v1002 = vadd.f32 0.0, %v1001
        %v1003 = vpop.f32.mrb[0].mxu0
        %1004 = vdwg.mxu0
        %v1005 = vpack.c.b16 %v761, %v759
        %v1006 = vpack.c.b16 %v765, %v763
        %v1007 = vpack.c.b16 %v769, %v767
        %v1008 = vpack.c.b16 %v773, %v771
        %v1011 = vunpack.c.l.b16 %v749
        %v1012 = vunpack.c.l.b16 %v750
        %v1013 = vpack.c.b16 %v1012, %v1011
        %v1016 = vsel %vm927, %v1005, 0
        %v1019 = vsel %vm927, %v1006, 0
        %v1022 = vsel %vm927, %v1007, 0
        %v1025 = vsel %vm927, %v1008, 0
        %1027 = vmatprep.subr.bf16.mxu0 0
        %1028 = vmatpush1.bf16.msra.mxu0 %v1013
        %1029 = vmatprep.subr.bf16.mxu0 0
        %1030 = vmatpush1.bf16.msra.mxu0 0
        %1031 = vmatprep.subr.bf16.mxu0 0
        %1032 = vmatpush1.bf16.msra.mxu0 0
        %1033 = vmatprep.subr.bf16.mxu0 0
        %1034 = vmatpush1.bf16.msra.mxu0 0
        %1035 = vmatprep.subr.bf16.mxu0 0
        %1036 = vmatpush1.bf16.msra.mxu0 0
        %1037 = vmatprep.subr.bf16.mxu0 0
        %1038 = vmatpush1.bf16.msra.mxu0 0
        %1039 = vmatprep.subr.bf16.mxu0 0
        %1040 = vmatpush1.bf16.msra.mxu0 0
        %1041 = vmatprep.subr.bf16.mxu0 0
        %1042 = vmatpush1.bf16.msra.mxu0 0
        %1043 = vmatprep.subr.bf16.mxu0 0
        %1044 = vmatpush1.bf16.msra.mxu0 0
        %1045 = vmatprep.subr.bf16.mxu0 0
        %1046 = vmatpush1.bf16.msra.mxu0 0
        %1047 = vmatprep.subr.bf16.mxu0 0
        %1048 = vmatpush1.bf16.msra.mxu0 0
        %1049 = vmatprep.subr.bf16.mxu0 0
        %1050 = vmatpush1.bf16.msra.mxu0 0
        %1051 = vmatprep.subr.bf16.mxu0 0
        %1052 = vmatpush1.bf16.msra.mxu0 0
        %1053 = vmatprep.subr.bf16.mxu0 0
        %1054 = vmatpush1.bf16.msra.mxu0 0
        %1055 = vmatprep.subr.bf16.mxu0 0
        %1056 = vmatpush1.bf16.msra.mxu0 0
        %1057 = vmatprep.subr.bf16.mxu0 0
        %1058 = vmatpush1.bf16.msra.mxu0 0
        %1059 = vmatprep.mubr.bf16.mxu0 0
        %1060 = vmatmul.mubr.bf16.gmra.mrb[0].mxu0 %v1016
        %v1061 = vpop.f32.mrb[0].mxu0
        %v1062 = vadd.f32 %v975, %v1061
        %v1063 = vpop.f32.mrb[0].mxu0
        %v1064 = vpop.f32.mrb[0].mxu0
        %v1065 = vadd.f32 %v978, %v1064
        %v1066 = vpop.f32.mrb[0].mxu0
        %1067 = vmatprep.mubr.bf16.mxu0 0
        %1068 = vmatmul.mubr.bf16.gmra.mrb[0].mxu0 %v1019
        %v1069 = vpop.f32.mrb[0].mxu0
        %v1070 = vadd.f32 %v983, %v1069
        %v1071 = vpop.f32.mrb[0].mxu0
        %v1072 = vpop.f32.mrb[0].mxu0
        %v1073 = vadd.f32 %v986, %v1072
        %v1074 = vpop.f32.mrb[0].mxu0
        %1075 = vmatprep.mubr.bf16.mxu0 0
        %1076 = vmatmul.mubr.bf16.gmra.mrb[0].mxu0 %v1022
        %v1077 = vpop.f32.mrb[0].mxu0
        %v1078 = vadd.f32 %v991, %v1077
        %v1079 = vpop.f32.mrb[0].mxu0
        %v1080 = vpop.f32.mrb[0].mxu0
        %v1081 = vadd.f32 %v994, %v1080
        %v1082 = vpop.f32.mrb[0].mxu0
        %1083 = vmatprep.mubr.bf16.mxu0 0
        %1084 = vmatmul.mubr.bf16.gmra.mrb[0].mxu0 %v1025
        %v1085 = vpop.f32.mrb[0].mxu0
        %v1086 = vadd.f32 %v999, %v1085
        %v1087 = vpop.f32.mrb[0].mxu0
        %v1088 = vpop.f32.mrb[0].mxu0
        %v1089 = vadd.f32 %v1002, %v1088
        %v1090 = vpop.f32.mrb[0].mxu0
        %1091 = vdwg.mxu0
        %s1092 = scalar_lea.vmem [#allocation5], 16
        %v1093 = vld [vmem:[%s1092] sm:$0xf]
        %v1094 = vld [vmem:[%s1092 + $0x4] sm:$0xf]
        %v1096 = vunpack.c.l.b16 %v748
        %v1097 = vpack.c.b16 %v763, %v761
        %v1098 = vpack.c.b16 %v767, %v765
        %v1099 = vpack.c.b16 %v771, %v769
        %v1100 = vpack.c.b16 %v1096, %v773
        %v1103 = vunpack.c.l.b16 %v1093
        %v1104 = vunpack.c.l.b16 %v1094
        %v1105 = vpack.c.b16 %v1104, %v1103
        %v1108 = vsel %vm927, %v1097, 0
        %v1111 = vsel %vm927, %v1098, 0
        %v1114 = vsel %vm927, %v1099, 0
        %v1117 = vsel %vm927, %v1100, 0
        %1119 = vmatprep.subr.bf16.mxu0 0
        %1120 = vmatpush1.bf16.msra.mxu0 %v1105
        %1121 = vmatprep.subr.bf16.mxu0 0
        %1122 = vmatpush1.bf16.msra.mxu0 0
        %1123 = vmatprep.subr.bf16.mxu0 0
        %1124 = vmatpush1.bf16.msra.mxu0 0
        %1125 = vmatprep.subr.bf16.mxu0 0
        %1126 = vmatpush1.bf16.msra.mxu0 0
        %1127 = vmatprep.subr.bf16.mxu0 0
        %1128 = vmatpush1.bf16.msra.mxu0 0
        %1129 = vmatprep.subr.bf16.mxu0 0
        %1130 = vmatpush1.bf16.msra.mxu0 0
        %1131 = vmatprep.subr.bf16.mxu0 0
        %1132 = vmatpush1.bf16.msra.mxu0 0
        %1133 = vmatprep.subr.bf16.mxu0 0
        %1134 = vmatpush1.bf16.msra.mxu0 0
        %1135 = vmatprep.subr.bf16.mxu0 0
        %1136 = vmatpush1.bf16.msra.mxu0 0
        %1137 = vmatprep.subr.bf16.mxu0 0
        %1138 = vmatpush1.bf16.msra.mxu0 0
        %1139 = vmatprep.subr.bf16.mxu0 0
        %1140 = vmatpush1.bf16.msra.mxu0 0
        %1141 = vmatprep.subr.bf16.mxu0 0
        %1142 = vmatpush1.bf16.msra.mxu0 0
        %1143 = vmatprep.subr.bf16.mxu0 0
        %1144 = vmatpush1.bf16.msra.mxu0 0
        %1145 = vmatprep.subr.bf16.mxu0 0
        %1146 = vmatpush1.bf16.msra.mxu0 0
        %1147 = vmatprep.subr.bf16.mxu0 0
        %1148 = vmatpush1.bf16.msra.mxu0 0
        %1149 = vmatprep.subr.bf16.mxu0 0
        %1150 = vmatpush1.bf16.msra.mxu0 0
        %1151 = vmatprep.mubr.bf16.mxu0 0
        %1152 = vmatmul.mubr.bf16.gmra.mrb[0].mxu0 %v1108
        %v1153 = vpop.f32.mrb[0].mxu0
        %v1154 = vadd.f32 0.0, %v1153
        %v1155 = vpop.f32.mrb[0].mxu0
        %v1156 = vpop.f32.mrb[0].mxu0
        %v1157 = vadd.f32 0.0, %v1156
        %v1158 = vpop.f32.mrb[0].mxu0
        %1159 = vmatprep.mubr.bf16.mxu0 0
        %1160 = vmatmul.mubr.bf16.gmra.mrb[0].mxu0 %v1111
        %v1161 = vpop.f32.mrb[0].mxu0
        %v1162 = vadd.f32 0.0, %v1161
        %v1163 = vpop.f32.mrb[0].mxu0
        %v1164 = vpop.f32.mrb[0].mxu0
        %v1165 = vadd.f32 0.0, %v1164
        %v1166 = vpop.f32.mrb[0].mxu0
        %1167 = vmatprep.mubr.bf16.mxu0 0
        %1168 = vmatmul.mubr.bf16.gmra.mrb[0].mxu0 %v1114
        %v1169 = vpop.f32.mrb[0].mxu0
        %v1170 = vadd.f32 0.0, %v1169
        %v1171 = vpop.f32.mrb[0].mxu0
        %v1172 = vpop.f32.mrb[0].mxu0
        %v1173 = vadd.f32 0.0, %v1172
        %v1174 = vpop.f32.mrb[0].mxu0
        %1175 = vmatprep.mubr.bf16.mxu0 0
        %1176 = vmatmul.mubr.bf16.gmra.mrb[0].mxu0 %v1117
        %v1177 = vpop.f32.mrb[0].mxu0
        %v1178 = vadd.f32 0.0, %v1177
        %v1179 = vpop.f32.mrb[0].mxu0
        %v1180 = vpop.f32.mrb[0].mxu0
        %v1181 = vadd.f32 0.0, %v1180
        %v1182 = vpop.f32.mrb[0].mxu0
        %1183 = vdwg.mxu0
        %v1184 = vadd.f32 %v1062, %v1154
        %v1185 = vadd.f32 %v1065, %v1157
        %v1186 = vadd.f32 %v1070, %v1162
        %v1187 = vadd.f32 %v1073, %v1165
        %v1188 = vadd.f32 %v1078, %v1170
        %v1189 = vadd.f32 %v1081, %v1173
        %v1190 = vadd.f32 %v1086, %v1178
        %v1191 = vadd.f32 %v1089, %v1181
        %v1192 = vunpack.c.h.b16 %v748
        %v1193 = vpack.c.b16 %v1096, %v1096
        %v1194 = vpack.c.b16 %v1192, %v1192
        %v1196 = vshrl.u32 %v1193, 16
        %v1198 = vrot.slane %v1196, 4
        %v1199 = vshll.u32 %v1193, 16
        %v1201 = vrot.slane %v1199, 5
        %v1202 = vor.u32 %v1198, %v1201
        %v1203 = vrot.slane %v1202, 4
        %v1205 = vshll.u32 %v1194, 16
        %v1207 = vrot.slane %v1205, 5
        %v1208 = vsel %vm793, %v1203, %v1207
        %s1209 = scalar_lea.vmem [#allocation5], 24
        %v1210 = vld [vmem:[%s1209] sm:$0xf]
        %v1211 = vld [vmem:[%s1209 + $0x4] sm:$0xf]
        %v1212 = vunpack.c.l.b16 %v1208
        %v1213 = vpack.c.b16 %v911, %v910
        %v1214 = vpack.c.b16 %v913, %v912
        %v1215 = vpack.c.b16 %v915, %v914
        %v1216 = vpack.c.b16 %v1212, %v916
        %v1219 = vunpack.c.l.b16 %v1210
        %v1220 = vunpack.c.l.b16 %v1211
        %v1221 = vpack.c.b16 %v1220, %v1219
        %v1224 = vsel %vm927, %v1213, 0
        %v1227 = vsel %vm927, %v1214, 0
        %v1230 = vsel %vm927, %v1215, 0
        %v1233 = vsel %vm927, %v1216, 0
        %1235 = vmatprep.subr.bf16.mxu0 0
        %1236 = vmatpush1.bf16.msra.mxu0 %v1221
        %1237 = vmatprep.subr.bf16.mxu0 0
        %1238 = vmatpush1.bf16.msra.mxu0 0
        %1239 = vmatprep.subr.bf16.mxu0 0
        %1240 = vmatpush1.bf16.msra.mxu0 0
        %1241 = vmatprep.subr.bf16.mxu0 0
        %1242 = vmatpush1.bf16.msra.mxu0 0
        %1243 = vmatprep.subr.bf16.mxu0 0
        %1244 = vmatpush1.bf16.msra.mxu0 0
        %1245 = vmatprep.subr.bf16.mxu0 0
        %1246 = vmatpush1.bf16.msra.mxu0 0
        %1247 = vmatprep.subr.bf16.mxu0 0
        %1248 = vmatpush1.bf16.msra.mxu0 0
        %1249 = vmatprep.subr.bf16.mxu0 0
        %1250 = vmatpush1.bf16.msra.mxu0 0
        %1251 = vmatprep.subr.bf16.mxu0 0
        %1252 = vmatpush1.bf16.msra.mxu0 0
        %1253 = vmatprep.subr.bf16.mxu0 0
        %1254 = vmatpush1.bf16.msra.mxu0 0
        %1255 = vmatprep.subr.bf16.mxu0 0
        %1256 = vmatpush1.bf16.msra.mxu0 0
        %1257 = vmatprep.subr.bf16.mxu0 0
        %1258 = vmatpush1.bf16.msra.mxu0 0
        %1259 = vmatprep.subr.bf16.mxu0 0
        %1260 = vmatpush1.bf16.msra.mxu0 0
        %1261 = vmatprep.subr.bf16.mxu0 0
        %1262 = vmatpush1.bf16.msra.mxu0 0
        %1263 = vmatprep.subr.bf16.mxu0 0
        %1264 = vmatpush1.bf16.msra.mxu0 0
        %1265 = vmatprep.subr.bf16.mxu0 0
        %1266 = vmatpush1.bf16.msra.mxu0 0
        %1267 = vmatprep.mubr.bf16.mxu0 0
        %1268 = vmatmul.mubr.bf16.gmra.mrb[0].mxu0 %v1224
        %v1269 = vpop.f32.mrb[0].mxu0
        %v1270 = vadd.f32 0.0, %v1269
        %v1271 = vpop.f32.mrb[0].mxu0
        %v1272 = vpop.f32.mrb[0].mxu0
        %v1273 = vadd.f32 0.0, %v1272
        %v1274 = vpop.f32.mrb[0].mxu0
        %1275 = vmatprep.mubr.bf16.mxu0 0
        %1276 = vmatmul.mubr.bf16.gmra.mrb[0].mxu0 %v1227
        %v1277 = vpop.f32.mrb[0].mxu0
        %v1278 = vadd.f32 0.0, %v1277
        %v1279 = vpop.f32.mrb[0].mxu0
        %v1280 = vpop.f32.mrb[0].mxu0
        %v1281 = vadd.f32 0.0, %v1280
        %v1282 = vpop.f32.mrb[0].mxu0
        %1283 = vmatprep.mubr.bf16.mxu0 0
        %1284 = vmatmul.mubr.bf16.gmra.mrb[0].mxu0 %v1230
        %v1285 = vpop.f32.mrb[0].mxu0
        %v1286 = vadd.f32 0.0, %v1285
        %v1287 = vpop.f32.mrb[0].mxu0
        %v1288 = vpop.f32.mrb[0].mxu0
        %v1289 = vadd.f32 0.0, %v1288
        %v1290 = vpop.f32.mrb[0].mxu0
        %1291 = vmatprep.mubr.bf16.mxu0 0
        %1292 = vmatmul.mubr.bf16.gmra.mrb[0].mxu0 %v1233
        %v1293 = vpop.f32.mrb[0].mxu0
        %v1294 = vadd.f32 0.0, %v1293
        %v1295 = vpop.f32.mrb[0].mxu0
        %v1296 = vpop.f32.mrb[0].mxu0
        %v1297 = vadd.f32 0.0, %v1296
        %v1298 = vpop.f32.mrb[0].mxu0
        %1299 = vdwg.mxu0
        %v1300 = vadd.f32 %v1184, %v1270
        %v1301 = vadd.f32 %v1185, %v1273
        %v1302 = vadd.f32 %v1186, %v1278
        %v1303 = vadd.f32 %v1187, %v1281
        %v1304 = vadd.f32 %v1188, %v1286
        %v1305 = vadd.f32 %v1189, %v1289
        %v1306 = vadd.f32 %v1190, %v1294
        %v1307 = vadd.f32 %v1191, %v1297
        %v1308 = vmax.f32 %v1300, 0.0
        %v1309 = vmax.f32 %v1301, 0.0
        %v1310 = vmax.f32 %v1302, 0.0
        %v1311 = vmax.f32 %v1303, 0.0
        %v1312 = vmax.f32 %v1304, 0.0
        %v1313 = vmax.f32 %v1305, 0.0
        %v1314 = vmax.f32 %v1306, 0.0
        %v1315 = vmax.f32 %v1307, 0.0
        %v1316 = vpack.c.bf16 %v1309, %v1308
        %v1317 = vpack.c.bf16 %v1311, %v1310
        %v1318 = vpack.c.bf16 %v1313, %v1312
        %v1319 = vpack.c.bf16 %v1315, %v1314
        %v1324 = vunpack.c.l.b16 %v1316
        %v1325 = vunpack.c.h.b16 %v1316
        %v1326 = vunpack.c.l.b16 %v1317
        %v1327 = vunpack.c.h.b16 %v1317
        %v1328 = vunpack.c.l.b16 %v1318
        %v1329 = vunpack.c.h.b16 %v1318
        %v1330 = vunpack.c.l.b16 %v1319
        %v1331 = vunpack.c.h.b16 %v1319
        %v1332 = vpack.c.b16 %v1324, %v1324
        %v1333 = vpack.c.b16 %v1325, %v1325
        %v1334 = vpack.c.b16 %v1326, %v1326
        %v1335 = vpack.c.b16 %v1327, %v1327
        %v1336 = vpack.c.b16 %v1328, %v1328
        %v1337 = vpack.c.b16 %v1329, %v1329
        %v1338 = vpack.c.b16 %v1330, %v1330
        %v1339 = vpack.c.b16 %v1331, %v1331
        %v1341 = vshrl.u32 %v1332, 16
        %v1343 = vrot.slane %v1341, 7
        %v1344 = vshll.u32 %v1332, 16
        %v1346 = vor.u32 %v1343, %v1344
        %v1348 = vshrl.u32 %v1333, 16
        %v1350 = vrot.slane %v1348, 7
        %v1351 = vshll.u32 %v1333, 16
        %v1353 = vor.u32 %v1350, %v1351
        %v1355 = vshrl.u32 %v1334, 16
        %v1357 = vrot.slane %v1355, 7
        %v1358 = vshll.u32 %v1334, 16
        %v1360 = vor.u32 %v1357, %v1358
        %v1362 = vshrl.u32 %v1335, 16
        %v1364 = vrot.slane %v1362, 7
        %v1365 = vshll.u32 %v1335, 16
        %v1367 = vor.u32 %v1364, %v1365
        %v1369 = vshrl.u32 %v1336, 16
        %v1371 = vrot.slane %v1369, 7
        %v1372 = vshll.u32 %v1336, 16
        %v1374 = vor.u32 %v1371, %v1372
        %v1376 = vshrl.u32 %v1337, 16
        %v1378 = vrot.slane %v1376, 7
        %v1379 = vshll.u32 %v1337, 16
        %v1381 = vor.u32 %v1378, %v1379
        %v1383 = vshrl.u32 %v1338, 16
        %v1385 = vrot.slane %v1383, 7
        %v1386 = vshll.u32 %v1338, 16
        %v1388 = vor.u32 %v1385, %v1386
        %v1390 = vshrl.u32 %v1339, 16
        %v1392 = vrot.slane %v1390, 7
        %v1393 = vshll.u32 %v1339, 16
        %v1395 = vor.u32 %v1392, %v1393
        %v1404 = vsel %vm476, 0, %v1346
        %v1405 = vsel %vm476, 0, %v1353
        %v1406 = vsel %vm476, 0, %v1360
        %v1407 = vsel %vm476, 0, %v1367
        %v1408 = vsel %vm476, 0, %v1374
        %v1409 = vsel %vm476, 0, %v1381
        %v1410 = vsel %vm476, 0, %v1388
        %v1411 = vsel %vm476, 0, %v1395
        %vm1412 = vcmask 1044480
        %vm1413 = vsmask.f32 4352
        %vm1414 = vmand %vm1412, %vm1413
        %v1415 = vsel %vm1414, %v477, 0
        %v1416 = vsel %vm1414, %v1404, 0
        %v1417 = vsel %vm1414, %v1405, 0
        %v1418 = vsel %vm1414, %v1406, 0
        %v1419 = vsel %vm1414, %v1407, 0
        %v1420 = vsel %vm1414, %v1408, 0
        %v1421 = vsel %vm1414, %v1409, 0
        %v1422 = vsel %vm1414, %v1410, 0
        %v1423 = vsel %vm1414, %v1411, 0
        %v1425 = vshrl.u32 %v1415, 16
        %v1427 = vshll.u32 %v1415, 16
        %v1429 = vrot.slane %v1427, 1
        %v1430 = vor.u32 %v1425, %v1429
        %v1432 = vshrl.u32 %v1416, 16
        %v1434 = vshll.u32 %v1416, 16
        %v1436 = vrot.slane %v1434, 1
        %v1437 = vor.u32 %v1432, %v1436
        %v1439 = vshrl.u32 %v1417, 16
        %v1441 = vshll.u32 %v1417, 16
        %v1443 = vrot.slane %v1441, 1
        %v1444 = vor.u32 %v1439, %v1443
        %v1446 = vshrl.u32 %v1418, 16
        %v1448 = vshll.u32 %v1418, 16
        %v1450 = vrot.slane %v1448, 1
        %v1451 = vor.u32 %v1446, %v1450
        %v1453 = vshrl.u32 %v1419, 16
        %v1455 = vshll.u32 %v1419, 16
        %v1457 = vrot.slane %v1455, 1
        %v1458 = vor.u32 %v1453, %v1457
        %v1460 = vshrl.u32 %v1420, 16
        %v1462 = vshll.u32 %v1420, 16
        %v1464 = vrot.slane %v1462, 1
        %v1465 = vor.u32 %v1460, %v1464
        %v1467 = vshrl.u32 %v1421, 16
        %v1469 = vshll.u32 %v1421, 16
        %v1471 = vrot.slane %v1469, 1
        %v1472 = vor.u32 %v1467, %v1471
        %v1474 = vshrl.u32 %v1422, 16
        %v1476 = vshll.u32 %v1422, 16
        %v1478 = vrot.slane %v1476, 1
        %v1479 = vor.u32 %v1474, %v1478
        %v1481 = vshrl.u32 %v1423, 16
        %v1483 = vshll.u32 %v1423, 16
        %v1485 = vrot.slane %v1483, 1
        %v1486 = vor.u32 %v1481, %v1485
        %1487 = vrot.lane.b32.xlu0 %v1430, 8
        %v1488 = vpop.permute.xlu0 %1487
        %1489 = vrot.lane.b32.xlu0 %v1437, 8
        %v1490 = vpop.permute.xlu0 %1489
        %1491 = vrot.lane.b32.xlu0 %v1444, 8
        %v1492 = vpop.permute.xlu0 %1491
        %1493 = vrot.lane.b32.xlu0 %v1451, 8
        %v1494 = vpop.permute.xlu0 %1493
        %1495 = vrot.lane.b32.xlu0 %v1458, 8
        %v1496 = vpop.permute.xlu0 %1495
        %1497 = vrot.lane.b32.xlu0 %v1465, 8
        %v1498 = vpop.permute.xlu0 %1497
        %1499 = vrot.lane.b32.xlu0 %v1472, 8
        %v1500 = vpop.permute.xlu0 %1499
        %1501 = vrot.lane.b32.xlu0 %v1479, 8
        %v1502 = vpop.permute.xlu0 %1501
        %1503 = vrot.lane.b32.xlu0 %v1486, 8
        %v1504 = vpop.permute.xlu0 %1503
        %1514 = vrot.lane.b32.xlu0 %v1416, 16
        %v1515 = vpop.permute.xlu0 %1514
        %1516 = vrot.lane.b32.xlu0 %v1417, 16
        %v1517 = vpop.permute.xlu0 %1516
        %1518 = vrot.lane.b32.xlu0 %v1418, 16
        %v1519 = vpop.permute.xlu0 %1518
        %1520 = vrot.lane.b32.xlu0 %v1419, 16
        %v1521 = vpop.permute.xlu0 %1520
        %1522 = vrot.lane.b32.xlu0 %v1420, 16
        %v1523 = vpop.permute.xlu0 %1522
        %1524 = vrot.lane.b32.xlu0 %v1421, 16
        %v1525 = vpop.permute.xlu0 %1524
        %1526 = vrot.lane.b32.xlu0 %v1422, 16
        %v1527 = vpop.permute.xlu0 %1526
        %1528 = vrot.lane.b32.xlu0 %v1423, 16
        %v1529 = vpop.permute.xlu0 %1528
        %1530 = vrot.lane.b32.xlu0 %v1415, 16
        %v1531 = vpop.permute.xlu0 %1530
        %1532 = vrot.lane.b32.xlu0 %v1437, 24
        %v1533 = vpop.permute.xlu0 %1532
        %1534 = vrot.lane.b32.xlu0 %v1444, 24
        %v1535 = vpop.permute.xlu0 %1534
        %1536 = vrot.lane.b32.xlu0 %v1451, 24
        %v1537 = vpop.permute.xlu0 %1536
        %1538 = vrot.lane.b32.xlu0 %v1458, 24
        %v1539 = vpop.permute.xlu0 %1538
        %1540 = vrot.lane.b32.xlu0 %v1465, 24
        %v1541 = vpop.permute.xlu0 %1540
        %1542 = vrot.lane.b32.xlu0 %v1472, 24
        %v1543 = vpop.permute.xlu0 %1542
        %1544 = vrot.lane.b32.xlu0 %v1479, 24
        %v1545 = vpop.permute.xlu0 %1544
        %1546 = vrot.lane.b32.xlu0 %v1486, 24
        %v1547 = vpop.permute.xlu0 %1546
        %1548 = vrot.lane.b32.xlu0 %v1430, 24
        %v1549 = vpop.permute.xlu0 %1548
        %v1551 = vsel %vm711, %v1415, %v1488
        %v1553 = vsel %vm711, %v1416, %v1490
        %v1555 = vsel %vm711, %v1417, %v1492
        %v1557 = vsel %vm711, %v1418, %v1494
        %v1559 = vsel %vm711, %v1419, %v1496
        %v1561 = vsel %vm711, %v1420, %v1498
        %v1563 = vsel %vm711, %v1421, %v1500
        %v1565 = vsel %vm711, %v1422, %v1502
        %v1567 = vsel %vm711, %v1423, %v1504
        %v1569 = vsel %vm927, %v1551, %v1515
        %v1571 = vsel %vm927, %v1553, %v1517
        %v1573 = vsel %vm927, %v1555, %v1519
        %v1575 = vsel %vm927, %v1557, %v1521
        %v1577 = vsel %vm927, %v1559, %v1523
        %v1579 = vsel %vm927, %v1561, %v1525
        %v1581 = vsel %vm927, %v1563, %v1527
        %v1583 = vsel %vm927, %v1565, %v1529
        %v1585 = vsel %vm927, %v1567, %v1531
        %vm1586 = vcmask 195584
        %v1588 = vsel %vm1586, %v1569, %v1533
        %v1590 = vsel %vm1586, %v1571, %v1535
        %v1592 = vsel %vm1586, %v1573, %v1537
        %v1594 = vsel %vm1586, %v1575, %v1539
        %v1596 = vsel %vm1586, %v1577, %v1541
        %v1598 = vsel %vm1586, %v1579, %v1543
        %v1600 = vsel %vm1586, %v1581, %v1545
        %v1602 = vsel %vm1586, %v1583, %v1547
        %v1604 = vsel %vm1586, %v1585, %v1549
        %v1605 = vld [vmem:[#allocation8] sm:$0x1]
        %v1606 = vld [vmem:[#allocation10] sm:$0x1]
        %v1607 = vld [vmem:[#allocation7] sm:$0xf]
        %v1608 = vld [vmem:[#allocation7 + $0x4] sm:$0xf]
        %v1609 = vld [vmem:[#allocation7 + $0x8] sm:$0xf]
        %v1610 = vld [vmem:[#allocation7 + $0xc] sm:$0xf]
        %v1619 = vunpack.c.l.b16 %v1588
        %v1620 = vunpack.c.l.b16 %v1590
        %v1621 = vunpack.c.l.b16 %v1592
        %v1622 = vunpack.c.l.b16 %v1594
        %v1623 = vunpack.c.l.b16 %v1596
        %v1624 = vunpack.c.l.b16 %v1598
        %v1625 = vunpack.c.l.b16 %v1600
        %v1626 = vunpack.c.l.b16 %v1602
        %v1627 = vpack.c.b16 %v1620, %v1619
        %v1628 = vpack.c.b16 %v1622, %v1621
        %v1629 = vpack.c.b16 %v1624, %v1623
        %v1630 = vpack.c.b16 %v1626, %v1625
        %v1635 = vunpack.c.l.b16 %v1607
        %v1636 = vunpack.c.l.b16 %v1608
        %v1637 = vunpack.c.l.b16 %v1609
        %v1638 = vunpack.c.l.b16 %v1610
        %v1639 = vpack.c.b16 %v1636, %v1635
        %v1640 = vpack.c.b16 %v1638, %v1637
        %vm1643 = vcmask 261120
        %v1645 = vsel %vm1643, %v1627, 0
        %v1648 = vsel %vm1643, %v1628, 0
        %v1651 = vsel %vm1643, %v1629, 0
        %v1654 = vsel %vm1643, %v1630, 0
        %1656 = vmatprep.subr.bf16.mxu0 0
        %1657 = vmatpush1.bf16.msra.mxu0 %v1639
        %1658 = vmatprep.subr.bf16.mxu0 0
        %1659 = vmatpush1.bf16.msra.mxu0 %v1640
        %1660 = vmatprep.subr.bf16.mxu0 0
        %1661 = vmatpush1.bf16.msra.mxu0 0
        %1662 = vmatprep.subr.bf16.mxu0 0
        %1663 = vmatpush1.bf16.msra.mxu0 0
        %1664 = vmatprep.subr.bf16.mxu0 0
        %1665 = vmatpush1.bf16.msra.mxu0 0
        %1666 = vmatprep.subr.bf16.mxu0 0
        %1667 = vmatpush1.bf16.msra.mxu0 0
        %1668 = vmatprep.subr.bf16.mxu0 0
        %1669 = vmatpush1.bf16.msra.mxu0 0
        %1670 = vmatprep.subr.bf16.mxu0 0
        %1671 = vmatpush1.bf16.msra.mxu0 0
        %1672 = vmatprep.subr.bf16.mxu0 0
        %1673 = vmatpush1.bf16.msra.mxu0 0
        %1674 = vmatprep.subr.bf16.mxu0 0
        %1675 = vmatpush1.bf16.msra.mxu0 0
        %1676 = vmatprep.subr.bf16.mxu0 0
        %1677 = vmatpush1.bf16.msra.mxu0 0
        %1678 = vmatprep.subr.bf16.mxu0 0
        %1679 = vmatpush1.bf16.msra.mxu0 0
        %1680 = vmatprep.subr.bf16.mxu0 0
        %1681 = vmatpush1.bf16.msra.mxu0 0
        %1682 = vmatprep.subr.bf16.mxu0 0
        %1683 = vmatpush1.bf16.msra.mxu0 0
        %1684 = vmatprep.subr.bf16.mxu0 0
        %1685 = vmatpush1.bf16.msra.mxu0 0
        %1686 = vmatprep.subr.bf16.mxu0 0
        %1687 = vmatpush1.bf16.msra.mxu0 0
        %1688 = vmatprep.mubr.bf16.mxu0 0
        %1689 = vmatmul.mubr.bf16.gmra.mrb[0].mxu0 %v1645
        %v1690 = vpop.f32.mrb[0].mxu0
        %v1691 = vadd.f32 0.0, %v1690
        %v1692 = vpop.f32.mrb[0].mxu0
        %v1693 = vpop.f32.mrb[0].mxu0
        %v1694 = vadd.f32 0.0, %v1693
        %v1695 = vpop.f32.mrb[0].mxu0
        %1696 = vmatprep.mubr.bf16.mxu0 0
        %1697 = vmatmul.mubr.bf16.gmra.mrb[0].mxu0 %v1648
        %v1698 = vpop.f32.mrb[0].mxu0
        %v1699 = vadd.f32 0.0, %v1698
        %v1700 = vpop.f32.mrb[0].mxu0
        %v1701 = vpop.f32.mrb[0].mxu0
        %v1702 = vadd.f32 0.0, %v1701
        %v1703 = vpop.f32.mrb[0].mxu0
        %1704 = vmatprep.mubr.bf16.mxu0 0
        %1705 = vmatmul.mubr.bf16.gmra.mrb[0].mxu0 %v1651
        %v1706 = vpop.f32.mrb[0].mxu0
        %v1707 = vadd.f32 0.0, %v1706
        %v1708 = vpop.f32.mrb[0].mxu0
        %v1709 = vpop.f32.mrb[0].mxu0
        %v1710 = vadd.f32 0.0, %v1709
        %v1711 = vpop.f32.mrb[0].mxu0
        %1712 = vmatprep.mubr.bf16.mxu0 0
        %1713 = vmatmul.mubr.bf16.gmra.mrb[0].mxu0 %v1654
        %v1714 = vpop.f32.mrb[0].mxu0
        %v1715 = vadd.f32 0.0, %v1714
        %v1716 = vpop.f32.mrb[0].mxu0
        %v1717 = vpop.f32.mrb[0].mxu0
        %v1718 = vadd.f32 0.0, %v1717
        %v1719 = vpop.f32.mrb[0].mxu0
        %1720 = vdwg.mxu0
        %v1722 = vlaneseq
        %v1723 = vshrl.u32 %v1722, 7
        %v1724 = vsub.s32 0, %v1723
        %v1725 = vrot.slane %v1605, %v1724
        %v1727 = vmul.f32 %v1691, %v1725
        %v1728 = vmul.f32 %v1694, %v1725
        %v1729 = vmul.f32 %v1699, %v1725
        %v1730 = vmul.f32 %v1702, %v1725
        %v1731 = vmul.f32 %v1707, %v1725
        %v1732 = vmul.f32 %v1710, %v1725
        %v1733 = vmul.f32 %v1715, %v1725
        %v1734 = vmul.f32 %v1718, %v1725
        %v1736 = vlaneseq
        %v1737 = vshrl.u32 %v1736, 7
        %v1738 = vsub.s32 0, %v1737
        %v1739 = vrot.slane %v1606, %v1738
        %v1741 = vadd.f32 %v1727, %v1739
        %v1742 = vadd.f32 %v1728, %v1739
        %v1743 = vadd.f32 %v1729, %v1739
        %v1744 = vadd.f32 %v1730, %v1739
        %v1745 = vadd.f32 %v1731, %v1739
        %v1746 = vadd.f32 %v1732, %v1739
        %v1747 = vadd.f32 %v1733, %v1739
        %v1748 = vadd.f32 %v1734, %v1739
        %v1749 = vunpack.c.h.b16 %v1588
        %v1750 = vunpack.c.h.b16 %v1590
        %v1751 = vunpack.c.h.b16 %v1592
        %v1752 = vunpack.c.h.b16 %v1594
        %v1753 = vunpack.c.h.b16 %v1596
        %v1754 = vunpack.c.h.b16 %v1598
        %v1755 = vunpack.c.h.b16 %v1600
        %v1756 = vunpack.c.h.b16 %v1602
        %v1757 = vpack.c.b16 %v1619, %v1619
        %v1758 = vpack.c.b16 %v1749, %v1749
        %v1759 = vpack.c.b16 %v1620, %v1620
        %v1760 = vpack.c.b16 %v1750, %v1750
        %v1761 = vpack.c.b16 %v1621, %v1621
        %v1762 = vpack.c.b16 %v1751, %v1751
        %v1763 = vpack.c.b16 %v1622, %v1622
        %v1764 = vpack.c.b16 %v1752, %v1752
        %v1765 = vpack.c.b16 %v1623, %v1623
        %v1766 = vpack.c.b16 %v1753, %v1753
        %v1767 = vpack.c.b16 %v1624, %v1624
        %v1768 = vpack.c.b16 %v1754, %v1754
        %v1769 = vpack.c.b16 %v1625, %v1625
        %v1770 = vpack.c.b16 %v1755, %v1755
        %v1771 = vpack.c.b16 %v1626, %v1626
        %v1772 = vpack.c.b16 %v1756, %v1756
        %v1774 = vshrl.u32 %v1757, 16
        %v1776 = vrot.slane %v1774, 4
        %v1777 = vshll.u32 %v1757, 16
        %v1779 = vrot.slane %v1777, 5
        %v1780 = vor.u32 %v1776, %v1779
        %v1781 = vrot.slane %v1780, 4
        %v1783 = vshll.u32 %v1758, 16
        %v1785 = vrot.slane %v1783, 5
        %v1786 = vsel %vm793, %v1781, %v1785
        %v1788 = vshrl.u32 %v1759, 16
        %v1790 = vrot.slane %v1788, 4
        %v1791 = vshll.u32 %v1759, 16
        %v1793 = vrot.slane %v1791, 5
        %v1794 = vor.u32 %v1790, %v1793
        %v1795 = vrot.slane %v1794, 4
        %v1797 = vshll.u32 %v1760, 16
        %v1799 = vrot.slane %v1797, 5
        %v1800 = vsel %vm793, %v1795, %v1799
        %v1802 = vshrl.u32 %v1761, 16
        %v1804 = vrot.slane %v1802, 4
        %v1805 = vshll.u32 %v1761, 16
        %v1807 = vrot.slane %v1805, 5
        %v1808 = vor.u32 %v1804, %v1807
        %v1809 = vrot.slane %v1808, 4
        %v1811 = vshll.u32 %v1762, 16
        %v1813 = vrot.slane %v1811, 5
        %v1814 = vsel %vm793, %v1809, %v1813
        %v1816 = vshrl.u32 %v1763, 16
        %v1818 = vrot.slane %v1816, 4
        %v1819 = vshll.u32 %v1763, 16
        %v1821 = vrot.slane %v1819, 5
        %v1822 = vor.u32 %v1818, %v1821
        %v1823 = vrot.slane %v1822, 4
        %v1825 = vshll.u32 %v1764, 16
        %v1827 = vrot.slane %v1825, 5
        %v1828 = vsel %vm793, %v1823, %v1827
        %v1830 = vshrl.u32 %v1765, 16
        %v1832 = vrot.slane %v1830, 4
        %v1833 = vshll.u32 %v1765, 16
        %v1835 = vrot.slane %v1833, 5
        %v1836 = vor.u32 %v1832, %v1835
        %v1837 = vrot.slane %v1836, 4
        %v1839 = vshll.u32 %v1766, 16
        %v1841 = vrot.slane %v1839, 5
        %v1842 = vsel %vm793, %v1837, %v1841
        %v1844 = vshrl.u32 %v1767, 16
        %v1846 = vrot.slane %v1844, 4
        %v1847 = vshll.u32 %v1767, 16
        %v1849 = vrot.slane %v1847, 5
        %v1850 = vor.u32 %v1846, %v1849
        %v1851 = vrot.slane %v1850, 4
        %v1853 = vshll.u32 %v1768, 16
        %v1855 = vrot.slane %v1853, 5
        %v1856 = vsel %vm793, %v1851, %v1855
        %v1858 = vshrl.u32 %v1769, 16
        %v1860 = vrot.slane %v1858, 4
        %v1861 = vshll.u32 %v1769, 16
        %v1863 = vrot.slane %v1861, 5
        %v1864 = vor.u32 %v1860, %v1863
        %v1865 = vrot.slane %v1864, 4
        %v1867 = vshll.u32 %v1770, 16
        %v1869 = vrot.slane %v1867, 5
        %v1870 = vsel %vm793, %v1865, %v1869
        %v1872 = vshrl.u32 %v1771, 16
        %v1874 = vrot.slane %v1872, 4
        %v1875 = vshll.u32 %v1771, 16
        %v1877 = vrot.slane %v1875, 5
        %v1878 = vor.u32 %v1874, %v1877
        %v1879 = vrot.slane %v1878, 4
        %v1881 = vshll.u32 %v1772, 16
        %v1883 = vrot.slane %v1881, 5
        %v1884 = vsel %vm793, %v1879, %v1883
        %s1885 = scalar_lea.vmem [#allocation7], 16
        %v1886 = vld [vmem:[%s1885] sm:$0xf]
        %v1887 = vld [vmem:[%s1885 + $0x4] sm:$0xf]
        %v1888 = vld [vmem:[%s1885 + $0x8] sm:$0xf]
        %v1889 = vld [vmem:[%s1885 + $0xc] sm:$0xf]
        %v1890 = vunpack.c.l.b16 %v1786
        %v1891 = vunpack.c.l.b16 %v1800
        %v1892 = vunpack.c.l.b16 %v1814
        %v1893 = vunpack.c.l.b16 %v1828
        %v1894 = vunpack.c.l.b16 %v1842
        %v1895 = vunpack.c.l.b16 %v1856
        %v1896 = vunpack.c.l.b16 %v1870
        %v1897 = vunpack.c.l.b16 %v1884
        %v1898 = vpack.c.b16 %v1891, %v1890
        %v1899 = vpack.c.b16 %v1893, %v1892
        %v1900 = vpack.c.b16 %v1895, %v1894
        %v1901 = vpack.c.b16 %v1897, %v1896
        %v1906 = vunpack.c.l.b16 %v1886
        %v1907 = vunpack.c.l.b16 %v1887
        %v1908 = vunpack.c.l.b16 %v1888
        %v1909 = vunpack.c.l.b16 %v1889
        %v1910 = vpack.c.b16 %v1907, %v1906
        %v1911 = vpack.c.b16 %v1909, %v1908
        %v1915 = vsel %vm1643, %v1898, 0
        %v1918 = vsel %vm1643, %v1899, 0
        %v1921 = vsel %vm1643, %v1900, 0
        %v1924 = vsel %vm1643, %v1901, 0
        %1926 = vmatprep.subr.bf16.mxu0 0
        %1927 = vmatpush1.bf16.msra.mxu0 %v1910
        %1928 = vmatprep.subr.bf16.mxu0 0
        %1929 = vmatpush1.bf16.msra.mxu0 %v1911
        %1930 = vmatprep.subr.bf16.mxu0 0
        %1931 = vmatpush1.bf16.msra.mxu0 0
        %1932 = vmatprep.subr.bf16.mxu0 0
        %1933 = vmatpush1.bf16.msra.mxu0 0
        %1934 = vmatprep.subr.bf16.mxu0 0
        %1935 = vmatpush1.bf16.msra.mxu0 0
        %1936 = vmatprep.subr.bf16.mxu0 0
        %1937 = vmatpush1.bf16.msra.mxu0 0
        %1938 = vmatprep.subr.bf16.mxu0 0
        %1939 = vmatpush1.bf16.msra.mxu0 0
        %1940 = vmatprep.subr.bf16.mxu0 0
        %1941 = vmatpush1.bf16.msra.mxu0 0
        %1942 = vmatprep.subr.bf16.mxu0 0
        %1943 = vmatpush1.bf16.msra.mxu0 0
        %1944 = vmatprep.subr.bf16.mxu0 0
        %1945 = vmatpush1.bf16.msra.mxu0 0
        %1946 = vmatprep.subr.bf16.mxu0 0
        %1947 = vmatpush1.bf16.msra.mxu0 0
        %1948 = vmatprep.subr.bf16.mxu0 0
        %1949 = vmatpush1.bf16.msra.mxu0 0
        %1950 = vmatprep.subr.bf16.mxu0 0
        %1951 = vmatpush1.bf16.msra.mxu0 0
        %1952 = vmatprep.subr.bf16.mxu0 0
        %1953 = vmatpush1.bf16.msra.mxu0 0
        %1954 = vmatprep.subr.bf16.mxu0 0
        %1955 = vmatpush1.bf16.msra.mxu0 0
        %1956 = vmatprep.subr.bf16.mxu0 0
        %1957 = vmatpush1.bf16.msra.mxu0 0
        %1958 = vmatprep.mubr.bf16.mxu0 0
        %1959 = vmatmul.mubr.bf16.gmra.mrb[0].mxu0 %v1915
        %v1960 = vpop.f32.mrb[0].mxu0
        %v1961 = vadd.f32 0.0, %v1960
        %v1962 = vpop.f32.mrb[0].mxu0
        %v1963 = vpop.f32.mrb[0].mxu0
        %v1964 = vadd.f32 0.0, %v1963
        %v1965 = vpop.f32.mrb[0].mxu0
        %1966 = vmatprep.mubr.bf16.mxu0 0
        %1967 = vmatmul.mubr.bf16.gmra.mrb[0].mxu0 %v1918
        %v1968 = vpop.f32.mrb[0].mxu0
        %v1969 = vadd.f32 0.0, %v1968
        %v1970 = vpop.f32.mrb[0].mxu0
        %v1971 = vpop.f32.mrb[0].mxu0
        %v1972 = vadd.f32 0.0, %v1971
        %v1973 = vpop.f32.mrb[0].mxu0
        %1974 = vmatprep.mubr.bf16.mxu0 0
        %1975 = vmatmul.mubr.bf16.gmra.mrb[0].mxu0 %v1921
        %v1976 = vpop.f32.mrb[0].mxu0
        %v1977 = vadd.f32 0.0, %v1976
        %v1978 = vpop.f32.mrb[0].mxu0
        %v1979 = vpop.f32.mrb[0].mxu0
        %v1980 = vadd.f32 0.0, %v1979
        %v1981 = vpop.f32.mrb[0].mxu0
        %1982 = vmatprep.mubr.bf16.mxu0 0
        %1983 = vmatmul.mubr.bf16.gmra.mrb[0].mxu0 %v1924
        %v1984 = vpop.f32.mrb[0].mxu0
        %v1985 = vadd.f32 0.0, %v1984
        %v1986 = vpop.f32.mrb[0].mxu0
        %v1987 = vpop.f32.mrb[0].mxu0
        %v1988 = vadd.f32 0.0, %v1987
        %v1989 = vpop.f32.mrb[0].mxu0
        %1990 = vdwg.mxu0
        %v1991 = vmul.f32 %v1961, %v1725
        %v1992 = vmul.f32 %v1964, %v1725
        %v1993 = vmul.f32 %v1969, %v1725
        %v1994 = vmul.f32 %v1972, %v1725
        %v1995 = vmul.f32 %v1977, %v1725
        %v1996 = vmul.f32 %v1980, %v1725
        %v1997 = vmul.f32 %v1985, %v1725
        %v1998 = vmul.f32 %v1988, %v1725
        %v1999 = vadd.f32 %v1991, %v1739
        %v2000 = vadd.f32 %v1992, %v1739
        %v2001 = vadd.f32 %v1993, %v1739
        %v2002 = vadd.f32 %v1994, %v1739
        %v2003 = vadd.f32 %v1995, %v1739
        %v2004 = vadd.f32 %v1996, %v1739
        %v2005 = vadd.f32 %v1997, %v1739
        %v2006 = vadd.f32 %v1998, %v1739
        %s2007 = scalar_lea.vmem [#allocation7], 32
        %v2008 = vld [vmem:[%s2007] sm:$0xf]
        %v2009 = vld [vmem:[%s2007 + $0x4] sm:$0xf]
        %v2010 = vld [vmem:[%s2007 + $0x8] sm:$0xf]
        %v2011 = vld [vmem:[%s2007 + $0xc] sm:$0xf]
        %v2013 = vunpack.c.l.b16 %v1604
        %v2014 = vpack.c.b16 %v1621, %v1620
        %v2015 = vpack.c.b16 %v1623, %v1622
        %v2016 = vpack.c.b16 %v1625, %v1624
        %v2017 = vpack.c.b16 %v2013, %v1626
        %v2022 = vunpack.c.l.b16 %v2008
        %v2023 = vunpack.c.l.b16 %v2009
        %v2024 = vunpack.c.l.b16 %v2010
        %v2025 = vunpack.c.l.b16 %v2011
        %v2026 = vpack.c.b16 %v2023, %v2022
        %v2027 = vpack.c.b16 %v2025, %v2024
        %v2031 = vsel %vm1643, %v2014, 0
        %v2034 = vsel %vm1643, %v2015, 0
        %v2037 = vsel %vm1643, %v2016, 0
        %v2040 = vsel %vm1643, %v2017, 0
        %2042 = vmatprep.subr.bf16.mxu0 0
        %2043 = vmatpush1.bf16.msra.mxu0 %v2026
        %2044 = vmatprep.subr.bf16.mxu0 0
        %2045 = vmatpush1.bf16.msra.mxu0 %v2027
        %2046 = vmatprep.subr.bf16.mxu0 0
        %2047 = vmatpush1.bf16.msra.mxu0 0
        %2048 = vmatprep.subr.bf16.mxu0 0
        %2049 = vmatpush1.bf16.msra.mxu0 0
        %2050 = vmatprep.subr.bf16.mxu0 0
        %2051 = vmatpush1.bf16.msra.mxu0 0
        %2052 = vmatprep.subr.bf16.mxu0 0
        %2053 = vmatpush1.bf16.msra.mxu0 0
        %2054 = vmatprep.subr.bf16.mxu0 0
        %2055 = vmatpush1.bf16.msra.mxu0 0
        %2056 = vmatprep.subr.bf16.mxu0 0
        %2057 = vmatpush1.bf16.msra.mxu0 0
        %2058 = vmatprep.subr.bf16.mxu0 0
        %2059 = vmatpush1.bf16.msra.mxu0 0
        %2060 = vmatprep.subr.bf16.mxu0 0
        %2061 = vmatpush1.bf16.msra.mxu0 0
        %2062 = vmatprep.subr.bf16.mxu0 0
        %2063 = vmatpush1.bf16.msra.mxu0 0
        %2064 = vmatprep.subr.bf16.mxu0 0
        %2065 = vmatpush1.bf16.msra.mxu0 0
        %2066 = vmatprep.subr.bf16.mxu0 0
        %2067 = vmatpush1.bf16.msra.mxu0 0
        %2068 = vmatprep.subr.bf16.mxu0 0
        %2069 = vmatpush1.bf16.msra.mxu0 0
        %2070 = vmatprep.subr.bf16.mxu0 0
        %2071 = vmatpush1.bf16.msra.mxu0 0
        %2072 = vmatprep.subr.bf16.mxu0 0
        %2073 = vmatpush1.bf16.msra.mxu0 0
        %2074 = vmatprep.mubr.bf16.mxu0 0
        %2075 = vmatmul.mubr.bf16.gmra.mrb[0].mxu0 %v2031
        %v2076 = vpop.f32.mrb[0].mxu0
        %v2077 = vadd.f32 0.0, %v2076
        %v2078 = vpop.f32.mrb[0].mxu0
        %v2079 = vpop.f32.mrb[0].mxu0
        %v2080 = vadd.f32 0.0, %v2079
        %v2081 = vpop.f32.mrb[0].mxu0
        %2082 = vmatprep.mubr.bf16.mxu0 0
        %2083 = vmatmul.mubr.bf16.gmra.mrb[0].mxu0 %v2034
        %v2084 = vpop.f32.mrb[0].mxu0
        %v2085 = vadd.f32 0.0, %v2084
        %v2086 = vpop.f32.mrb[0].mxu0
        %v2087 = vpop.f32.mrb[0].mxu0
        %v2088 = vadd.f32 0.0, %v2087
        %v2089 = vpop.f32.mrb[0].mxu0
        %2090 = vmatprep.mubr.bf16.mxu0 0
        %2091 = vmatmul.mubr.bf16.gmra.mrb[0].mxu0 %v2037
        %v2092 = vpop.f32.mrb[0].mxu0
        %v2093 = vadd.f32 0.0, %v2092
        %v2094 = vpop.f32.mrb[0].mxu0
        %v2095 = vpop.f32.mrb[0].mxu0
        %v2096 = vadd.f32 0.0, %v2095
        %v2097 = vpop.f32.mrb[0].mxu0
        %2098 = vmatprep.mubr.bf16.mxu0 0
        %2099 = vmatmul.mubr.bf16.gmra.mrb[0].mxu0 %v2040
        %v2100 = vpop.f32.mrb[0].mxu0
        %v2101 = vadd.f32 0.0, %v2100
        %v2102 = vpop.f32.mrb[0].mxu0
        %v2103 = vpop.f32.mrb[0].mxu0
        %v2104 = vadd.f32 0.0, %v2103
        %v2105 = vpop.f32.mrb[0].mxu0
        %2106 = vdwg.mxu0
        %v2107 = vmul.f32 %v2077, %v1725
        %v2108 = vmul.f32 %v2080, %v1725
        %v2109 = vmul.f32 %v2085, %v1725
        %v2110 = vmul.f32 %v2088, %v1725
        %v2111 = vmul.f32 %v2093, %v1725
        %v2112 = vmul.f32 %v2096, %v1725
        %v2113 = vmul.f32 %v2101, %v1725
        %v2114 = vmul.f32 %v2104, %v1725
        %v2115 = vadd.f32 %v2107, %v1739
        %v2116 = vadd.f32 %v2108, %v1739
        %v2117 = vadd.f32 %v2109, %v1739
        %v2118 = vadd.f32 %v2110, %v1739
        %v2119 = vadd.f32 %v2111, %v1739
        %v2120 = vadd.f32 %v2112, %v1739
        %v2121 = vadd.f32 %v2113, %v1739
        %v2122 = vadd.f32 %v2114, %v1739
        %v2123 = vunpack.c.h.b16 %v1604
        %v2124 = vpack.c.b16 %v2013, %v2013
        %v2125 = vpack.c.b16 %v2123, %v2123
        %v2127 = vshrl.u32 %v2124, 16
        %v2129 = vrot.slane %v2127, 4
        %v2130 = vshll.u32 %v2124, 16
        %v2132 = vrot.slane %v2130, 5
        %v2133 = vor.u32 %v2129, %v2132
        %v2134 = vrot.slane %v2133, 4
        %v2136 = vshll.u32 %v2125, 16
        %v2138 = vrot.slane %v2136, 5
        %v2139 = vsel %vm793, %v2134, %v2138
        %s2140 = scalar_lea.vmem [#allocation7], 48
        %v2141 = vld [vmem:[%s2140] sm:$0xf]
        %v2142 = vld [vmem:[%s2140 + $0x4] sm:$0xf]
        %v2143 = vld [vmem:[%s2140 + $0x8] sm:$0xf]
        %v2144 = vld [vmem:[%s2140 + $0xc] sm:$0xf]
        %v2145 = vunpack.c.l.b16 %v2139
        %v2146 = vpack.c.b16 %v1892, %v1891
        %v2147 = vpack.c.b16 %v1894, %v1893
        %v2148 = vpack.c.b16 %v1896, %v1895
        %v2149 = vpack.c.b16 %v2145, %v1897
        %v2154 = vunpack.c.l.b16 %v2141
        %v2155 = vunpack.c.l.b16 %v2142
        %v2156 = vunpack.c.l.b16 %v2143
        %v2157 = vunpack.c.l.b16 %v2144
        %v2158 = vpack.c.b16 %v2155, %v2154
        %v2159 = vpack.c.b16 %v2157, %v2156
        %v2163 = vsel %vm1643, %v2146, 0
        %v2166 = vsel %vm1643, %v2147, 0
        %v2169 = vsel %vm1643, %v2148, 0
        %v2172 = vsel %vm1643, %v2149, 0
        %2174 = vmatprep.subr.bf16.mxu0 0
        %2175 = vmatpush1.bf16.msra.mxu0 %v2158
        %2176 = vmatprep.subr.bf16.mxu0 0
        %2177 = vmatpush1.bf16.msra.mxu0 %v2159
        %2178 = vmatprep.subr.bf16.mxu0 0
        %2179 = vmatpush1.bf16.msra.mxu0 0
        %2180 = vmatprep.subr.bf16.mxu0 0
        %2181 = vmatpush1.bf16.msra.mxu0 0
        %2182 = vmatprep.subr.bf16.mxu0 0
        %2183 = vmatpush1.bf16.msra.mxu0 0
        %2184 = vmatprep.subr.bf16.mxu0 0
        %2185 = vmatpush1.bf16.msra.mxu0 0
        %2186 = vmatprep.subr.bf16.mxu0 0
        %2187 = vmatpush1.bf16.msra.mxu0 0
        %2188 = vmatprep.subr.bf16.mxu0 0
        %2189 = vmatpush1.bf16.msra.mxu0 0
        %2190 = vmatprep.subr.bf16.mxu0 0
        %2191 = vmatpush1.bf16.msra.mxu0 0
        %2192 = vmatprep.subr.bf16.mxu0 0
        %2193 = vmatpush1.bf16.msra.mxu0 0
        %2194 = vmatprep.subr.bf16.mxu0 0
        %2195 = vmatpush1.bf16.msra.mxu0 0
        %2196 = vmatprep.subr.bf16.mxu0 0
        %2197 = vmatpush1.bf16.msra.mxu0 0
        %2198 = vmatprep.subr.bf16.mxu0 0
        %2199 = vmatpush1.bf16.msra.mxu0 0
        %2200 = vmatprep.subr.bf16.mxu0 0
        %2201 = vmatpush1.bf16.msra.mxu0 0
        %2202 = vmatprep.subr.bf16.mxu0 0
        %2203 = vmatpush1.bf16.msra.mxu0 0
        %2204 = vmatprep.subr.bf16.mxu0 0
        %2205 = vmatpush1.bf16.msra.mxu0 0
        %2206 = vmatprep.mubr.bf16.mxu0 0
        %2207 = vmatmul.mubr.bf16.gmra.mrb[0].mxu0 %v2163
        %v2208 = vpop.f32.mrb[0].mxu0
        %v2209 = vadd.f32 0.0, %v2208
        %v2210 = vpop.f32.mrb[0].mxu0
        %v2211 = vpop.f32.mrb[0].mxu0
        %v2212 = vadd.f32 0.0, %v2211
        %v2213 = vpop.f32.mrb[0].mxu0
        %2214 = vmatprep.mubr.bf16.mxu0 0
        %2215 = vmatmul.mubr.bf16.gmra.mrb[0].mxu0 %v2166
        %v2216 = vpop.f32.mrb[0].mxu0
        %v2217 = vadd.f32 0.0, %v2216
        %v2218 = vpop.f32.mrb[0].mxu0
        %v2219 = vpop.f32.mrb[0].mxu0
        %v2220 = vadd.f32 0.0, %v2219
        %v2221 = vpop.f32.mrb[0].mxu0
        %2222 = vmatprep.mubr.bf16.mxu0 0
        %2223 = vmatmul.mubr.bf16.gmra.mrb[0].mxu0 %v2169
        %v2224 = vpop.f32.mrb[0].mxu0
        %v2225 = vadd.f32 0.0, %v2224
        %v2226 = vpop.f32.mrb[0].mxu0
        %v2227 = vpop.f32.mrb[0].mxu0
        %v2228 = vadd.f32 0.0, %v2227
        %v2229 = vpop.f32.mrb[0].mxu0
        %2230 = vmatprep.mubr.bf16.mxu0 0
        %2231 = vmatmul.mubr.bf16.gmra.mrb[0].mxu0 %v2172
        %v2232 = vpop.f32.mrb[0].mxu0
        %v2233 = vadd.f32 0.0, %v2232
        %v2234 = vpop.f32.mrb[0].mxu0
        %v2235 = vpop.f32.mrb[0].mxu0
        %v2236 = vadd.f32 0.0, %v2235
        %v2237 = vpop.f32.mrb[0].mxu0
        %2238 = vdwg.mxu0
        %v2239 = vmul.f32 %v2209, %v1725
        %v2240 = vmul.f32 %v2212, %v1725
        %v2241 = vmul.f32 %v2217, %v1725
        %v2242 = vmul.f32 %v2220, %v1725
        %v2243 = vmul.f32 %v2225, %v1725
        %v2244 = vmul.f32 %v2228, %v1725
        %v2245 = vmul.f32 %v2233, %v1725
        %v2246 = vmul.f32 %v2236, %v1725
        %v2247 = vadd.f32 %v2239, %v1739
        %v2248 = vadd.f32 %v2240, %v1739
        %v2249 = vadd.f32 %v2241, %v1739
        %v2250 = vadd.f32 %v2242, %v1739
        %v2251 = vadd.f32 %v2243, %v1739
        %v2252 = vadd.f32 %v2244, %v1739
        %v2253 = vadd.f32 %v2245, %v1739
        %v2254 = vadd.f32 %v2246, %v1739
        %2263 = vrot.lane.b32.xlu0 %v1741, 4
        %v2264 = vpop.permute.xlu0 %2263
        %2265 = vrot.lane.b32.xlu0 %v1742, 4
        %v2266 = vpop.permute.xlu0 %2265
        %2267 = vrot.lane.b32.xlu0 %v1743, 4
        %v2268 = vpop.permute.xlu0 %2267
        %2269 = vrot.lane.b32.xlu0 %v1744, 4
        %v2270 = vpop.permute.xlu0 %2269
        %2271 = vrot.lane.b32.xlu0 %v1745, 4
        %v2272 = vpop.permute.xlu0 %2271
        %2273 = vrot.lane.b32.xlu0 %v1746, 4
        %v2274 = vpop.permute.xlu0 %2273
        %2275 = vrot.lane.b32.xlu0 %v1747, 4
        %v2276 = vpop.permute.xlu0 %2275
        %2277 = vrot.lane.b32.xlu0 %v1748, 4
        %v2278 = vpop.permute.xlu0 %2277
        %2295 = vrot.lane.b32.xlu0 %v298, 4
        %v2296 = vpop.permute.xlu0 %2295
        %2297 = vrot.lane.b32.xlu0 %v300, 4
        %v2298 = vpop.permute.xlu0 %2297
        %2299 = vrot.lane.b32.xlu0 %v302, 4
        %v2300 = vpop.permute.xlu0 %2299
        %2301 = vrot.lane.b32.xlu0 %v304, 4
        %v2302 = vpop.permute.xlu0 %2301
        %2303 = vrot.lane.b32.xlu0 %v306, 4
        %v2304 = vpop.permute.xlu0 %2303
        %2305 = vrot.lane.b32.xlu0 %v308, 4
        %v2306 = vpop.permute.xlu0 %2305
        %2307 = vrot.lane.b32.xlu0 %v310, 4
        %v2308 = vpop.permute.xlu0 %2307
        %2309 = vrot.lane.b32.xlu0 %v312, 4
        %v2310 = vpop.permute.xlu0 %2309
        %2327 = vrot.lane.b32.xlu0 %v1999, 12
        %v2328 = vpop.permute.xlu0 %2327
        %2329 = vrot.lane.b32.xlu0 %v2000, 12
        %v2330 = vpop.permute.xlu0 %2329
        %2331 = vrot.lane.b32.xlu0 %v2001, 12
        %v2332 = vpop.permute.xlu0 %2331
        %2333 = vrot.lane.b32.xlu0 %v2002, 12
        %v2334 = vpop.permute.xlu0 %2333
        %2335 = vrot.lane.b32.xlu0 %v2003, 12
        %v2336 = vpop.permute.xlu0 %2335
        %2337 = vrot.lane.b32.xlu0 %v2004, 12
        %v2338 = vpop.permute.xlu0 %2337
        %2339 = vrot.lane.b32.xlu0 %v2005, 12
        %v2340 = vpop.permute.xlu0 %2339
        %2341 = vrot.lane.b32.xlu0 %v2006, 12
        %v2342 = vpop.permute.xlu0 %2341
        %v2351 = vsel %vm683, %v298, %v2264
        %v2352 = vsel %vm683, %v300, %v2266
        %v2353 = vsel %vm683, %v302, %v2268
        %v2354 = vsel %vm683, %v304, %v2270
        %v2355 = vsel %vm683, %v306, %v2272
        %v2356 = vsel %vm683, %v308, %v2274
        %v2357 = vsel %vm683, %v310, %v2276
        %v2358 = vsel %vm683, %v312, %v2278
        %v2359 = vsel %vm711, %v2351, %v2296
        %v2360 = vsel %vm711, %v2352, %v2298
        %v2361 = vsel %vm711, %v2353, %v2300
        %v2362 = vsel %vm711, %v2354, %v2302
        %v2363 = vsel %vm711, %v2355, %v2304
        %v2364 = vsel %vm711, %v2356, %v2306
        %v2365 = vsel %vm711, %v2357, %v2308
        %v2366 = vsel %vm711, %v2358, %v2310
        %v2367 = vsel %vm730, %v2359, %v2328
        %v2368 = vsel %vm730, %v2360, %v2330
        %v2369 = vsel %vm730, %v2361, %v2332
        %v2370 = vsel %vm730, %v2362, %v2334
        %v2371 = vsel %vm730, %v2363, %v2336
        %v2372 = vsel %vm730, %v2364, %v2338
        %v2373 = vsel %vm730, %v2365, %v2340
        %v2374 = vsel %vm730, %v2366, %v2342
        %2383 = vrot.lane.b32.xlu0 %v2115, 4
        %v2384 = vpop.permute.xlu0 %2383
        %2385 = vrot.lane.b32.xlu0 %v2116, 4
        %v2386 = vpop.permute.xlu0 %2385
        %2387 = vrot.lane.b32.xlu0 %v2117, 4
        %v2388 = vpop.permute.xlu0 %2387
        %2389 = vrot.lane.b32.xlu0 %v2118, 4
        %v2390 = vpop.permute.xlu0 %2389
        %2391 = vrot.lane.b32.xlu0 %v2119, 4
        %v2392 = vpop.permute.xlu0 %2391
        %2393 = vrot.lane.b32.xlu0 %v2120, 4
        %v2394 = vpop.permute.xlu0 %2393
        %2395 = vrot.lane.b32.xlu0 %v2121, 4
        %v2396 = vpop.permute.xlu0 %2395
        %2397 = vrot.lane.b32.xlu0 %v2122, 4
        %v2398 = vpop.permute.xlu0 %2397
        %2415 = vrot.lane.b32.xlu0 %v299, 4
        %v2416 = vpop.permute.xlu0 %2415
        %2417 = vrot.lane.b32.xlu0 %v301, 4
        %v2418 = vpop.permute.xlu0 %2417
        %2419 = vrot.lane.b32.xlu0 %v303, 4
        %v2420 = vpop.permute.xlu0 %2419
        %2421 = vrot.lane.b32.xlu0 %v305, 4
        %v2422 = vpop.permute.xlu0 %2421
        %2423 = vrot.lane.b32.xlu0 %v307, 4
        %v2424 = vpop.permute.xlu0 %2423
        %2425 = vrot.lane.b32.xlu0 %v309, 4
        %v2426 = vpop.permute.xlu0 %2425
        %2427 = vrot.lane.b32.xlu0 %v311, 4
        %v2428 = vpop.permute.xlu0 %2427
        %2429 = vrot.lane.b32.xlu0 %v313, 4
        %v2430 = vpop.permute.xlu0 %2429
        %2447 = vrot.lane.b32.xlu0 %v2247, 12
        %v2448 = vpop.permute.xlu0 %2447
        %2449 = vrot.lane.b32.xlu0 %v2248, 12
        %v2450 = vpop.permute.xlu0 %2449
        %2451 = vrot.lane.b32.xlu0 %v2249, 12
        %v2452 = vpop.permute.xlu0 %2451
        %2453 = vrot.lane.b32.xlu0 %v2250, 12
        %v2454 = vpop.permute.xlu0 %2453
        %2455 = vrot.lane.b32.xlu0 %v2251, 12
        %v2456 = vpop.permute.xlu0 %2455
        %2457 = vrot.lane.b32.xlu0 %v2252, 12
        %v2458 = vpop.permute.xlu0 %2457
        %2459 = vrot.lane.b32.xlu0 %v2253, 12
        %v2460 = vpop.permute.xlu0 %2459
        %2461 = vrot.lane.b32.xlu0 %v2254, 12
        %v2462 = vpop.permute.xlu0 %2461
        %v2471 = vsel %vm683, %v299, %v2384
        %v2472 = vsel %vm683, %v301, %v2386
        %v2473 = vsel %vm683, %v303, %v2388
        %v2474 = vsel %vm683, %v305, %v2390
        %v2475 = vsel %vm683, %v307, %v2392
        %v2476 = vsel %vm683, %v309, %v2394
        %v2477 = vsel %vm683, %v311, %v2396
        %v2478 = vsel %vm683, %v313, %v2398
        %v2479 = vsel %vm711, %v2471, %v2416
        %v2480 = vsel %vm711, %v2472, %v2418
        %v2481 = vsel %vm711, %v2473, %v2420
        %v2482 = vsel %vm711, %v2474, %v2422
        %v2483 = vsel %vm711, %v2475, %v2424
        %v2484 = vsel %vm711, %v2476, %v2426
        %v2485 = vsel %vm711, %v2477, %v2428
        %v2486 = vsel %vm711, %v2478, %v2430
        %v2487 = vsel %vm730, %v2479, %v2448
        %v2488 = vsel %vm730, %v2480, %v2450
        %v2489 = vsel %vm730, %v2481, %v2452
        %v2490 = vsel %vm730, %v2482, %v2454
        %v2491 = vsel %vm730, %v2483, %v2456
        %v2492 = vsel %vm730, %v2484, %v2458
        %v2493 = vsel %vm730, %v2485, %v2460
        %v2494 = vsel %vm730, %v2486, %v2462
        %2495 = vst.msk [vmem:[%s296] sm:$0xff] %vm927, %v2367
        %2496 = vst.msk [vmem:[%s296 + $0x8] sm:$0xff] %vm927, %v2487
        %2497 = vst.msk [vmem:[%s296 + $0x10] sm:$0xff] %vm927, %v2368
        %2498 = vst.msk [vmem:[%s296 + $0x18] sm:$0xff] %vm927, %v2488
        %2499 = vst.msk [vmem:[%s296 + $0x20] sm:$0xff] %vm927, %v2369
        %2500 = vst.msk [vmem:[%s296 + $0x28] sm:$0xff] %vm927, %v2489
        %2501 = vst.msk [vmem:[%s296 + $0x30] sm:$0xff] %vm927, %v2370
        %2502 = vst.msk [vmem:[%s296 + $0x38] sm:$0xff] %vm927, %v2490
        %2503 = vst.msk [vmem:[%s296 + $0x40] sm:$0xff] %vm927, %v2371
        %2504 = vst.msk [vmem:[%s296 + $0x48] sm:$0xff] %vm927, %v2491
        %2505 = vst.msk [vmem:[%s296 + $0x50] sm:$0xff] %vm927, %v2372
        %2506 = vst.msk [vmem:[%s296 + $0x58] sm:$0xff] %vm927, %v2492
        %2507 = vst.msk [vmem:[%s296 + $0x60] sm:$0xff] %vm927, %v2373
        %2508 = vst.msk [vmem:[%s296 + $0x68] sm:$0xff] %vm927, %v2493
        %2509 = vst.msk [vmem:[%s296 + $0x70] sm:$0xff] %vm927, %v2374
        %2510 = vst.msk [vmem:[%s296 + $0x78] sm:$0xff] %vm927, %v2494
        %s2511 = sand.u32 %s142, 1
        %s2512 = scalar_lea.sflag [#allocation4], %s2511
        %s2513 = sand.u32 %s142, 1
        %s2514 = smul.addr %s2513, 128
        %s2515 = scalar_lea.vmem [#allocation11], %s2514
        // Predicated region
        $region61: #{tpu_custom_call.1} parent=39 // pred_check
          %p2516 = pneg %p152
        $region62: #{tpu_custom_call.1} parent=39 // pred_check_branch
          %2518 = sbr.rel (%p2516) target = $region64
        $region63: #{tpu_custom_call.1} parent=39 // pred_region
          %s2520 = ssub.s32 2048, 2048
          %2521 = vsyncadd %s2512, %s2520
          %s2522 = smul.addr %s24, 16
          %s2523 = smul.addr %s2522, 128
          %s2524 = scalar_lea.hbm %s5, %s2523
          %s2525 = sshll.u32 %s2515, 4
          %s2526 = int_to_ptr.vmem [resolvable:$true] %s2525
          %2531 = dma.vmem_to_hbm [thread:$0]  %s2526, 2048, %s2524, %s2512, 128, 128, 8
        $region64: #{tpu_custom_call.1} parent=39 // pred_fallthru
          _
      $region40: #{tpu_custom_call.1} parent=5 // pred_fallthru
        _
      %p2532 = scmp.le.s32.totalorder 2, %s19
      // Predicated region
      $region65: #{tpu_custom_call.1} parent=5 // pred_check
        %p2533 = pneg %p2532
      $region66: #{tpu_custom_call.1} parent=5 // pred_check_branch
        %2535 = sbr.rel (%p2533) target = $region68
      $region67: #{tpu_custom_call.1} parent=5 // pred_region
        %s2536 = ssub.s32 %s19, 2
        // Predicated region
        $region69: #{tpu_custom_call.1} parent=67 // pred_check
          %p2537 = pneg %p158
        $region70: #{tpu_custom_call.1} parent=67 // pred_check_branch
          %2539 = sbr.rel (%p2537) target = $region72
        $region71: #{tpu_custom_call.1} parent=67 // pred_region
          %s2540 = sand.u32 %s143, 1
          %s2541 = scalar_lea.sflag [#allocation4], %s2540
          %s2542 = sand.u32 %s143, 1
          %s2543 = smul.addr %s2542, 128
          %s2544 = scalar_lea.vmem [#allocation11], %s2543
          %2545 = dma.done %s2541, 2048
        $region72: #{tpu_custom_call.1} parent=67 // pred_fallthru
          _
      $region68: #{tpu_custom_call.1} parent=5 // pred_fallthru
        _
    $region6: #{tpu_custom_call.1} parent=1 // loop_footer
      %s23 = sadd.s32 1, %s19
    $region7: #{tpu_custom_call.1} parent=1 // loop_footer_branch
      %18 = sbr.rel target = $region3
    $region8: #{tpu_custom_call.1} parent=1 // loop_exit
      _
    %2546 = vsyncpa [#allocation3], 1
    %s2547 = scalar_lea.sflag [#allocation3], 1
    %2548 = vsyncpa %s2547, 1
    %2549 = vsyncpa [#allocation6], 1
    %2550 = vsyncpa [#allocation9], 1
    %2551 = vsyncpa [#allocation4], 1
    %s2552 = scalar_lea.sflag [#allocation4], 1
    %2553 = vsyncpa %s2552, 1

</llo_original>
